<compile_context>
chip_gen: v6e
topology: v6e:2x2x1
jax: 0.10.0
libtpu: 0.0.40
codegen_flags: <defaults>
</compile_context>

<pallas_src>
import functools

import jax
import jax.numpy as jnp
from jax import lax
from jax.experimental import pallas as pl
from jax.experimental.pallas import tpu as pltpu


def _layernorm(x, gamma, beta, eps=1e-5):
    # Single-pass moments: E[x] and E[x^2] are independent lane reductions.
    mean = jnp.mean(x, axis=-1, keepdims=True)
    mean_sq = jnp.mean(x * x, axis=-1, keepdims=True)
    var = mean_sq - mean * mean
    return (x - mean) * lax.rsqrt(var + eps) * gamma + beta


def transformer_layer_kernel(
    x_ref, cos_ref, sin_ref, rot_ref,
    ln1_g_ref, ln1_b_ref, wqkv_ref, wo_ref,
    ln2_g_ref, ln2_b_ref, wgu_ref, wd_ref,
    o_ref,
    q_sc, k_sc, v_sc, ctx_sc,
    *, num_heads: int, head_dim: int, kv_chunk: int,
):
    bt, s_len, d_model = x_ref.shape
    rows = bt * s_len
    hd = head_dim

    x = x_ref[...].astype(jnp.float32).reshape(rows, d_model)     # (rows, D)
    cos = cos_ref[...]                                            # (rows, D) f32
    sin = sin_ref[...]

    # ---------------- attention block (pre-LN) ----------------
    a_in = _layernorm(x, ln1_g_ref[...], ln1_b_ref[...]).astype(jnp.bfloat16)
    qkv = jnp.dot(a_in, wqkv_ref[...],
                  preferred_element_type=jnp.float32)             # (rows, 3D) f32
    q = qkv[:, 0 * d_model:1 * d_model]
    k = qkv[:, 1 * d_model:2 * d_model]
    v = qkv[:, 2 * d_model:3 * d_model]

    # Lane-dense rotate-half RoPE: rot(t) = t @ P (block-diagonal signed
    # permutation, one MXU matmul for all heads), then t*cos + rot(t)*sin.
    rot_q = jnp.dot(q.astype(jnp.bfloat16), rot_ref[...],
                    preferred_element_type=jnp.float32)
    rot_k = jnp.dot(k.astype(jnp.bfloat16), rot_ref[...],
                    preferred_element_type=jnp.float32)

    scale = 1.0 / (hd ** 0.5)
    # Fold the 1/sqrt(head_dim) score scale into q once.
    q_sc[...] = ((q * cos + rot_q * sin) * scale) \
        .reshape(bt, s_len, d_model).astype(q_sc.dtype)
    k_sc[...] = (k * cos + rot_k * sin) \
        .reshape(bt, s_len, d_model).astype(k_sc.dtype)
    v_sc[...] = v.reshape(bt, s_len, d_model).astype(v_sc.dtype)

    n_kv = s_len // kv_chunk

    # Static loop over heads (H is a small, static model constant).
    # TODO(synk): for large H move heads onto a grid axis / leading scratch axis.
    for h in range(num_heads):
        h0, h1 = h * hd, (h + 1) * hd
        qh = q_sc[:, :, h0:h1]                                    # (Bt, S, Hd) bf16

        def kv_body(ci, mla):
            m, l, acc = mla
            start = pl.multiple_of(ci * kv_chunk, kv_chunk)
            kc = k_sc[:, pl.ds(start, kv_chunk), h0:h1]           # (Bt, kc, Hd)
            vc = v_sc[:, pl.ds(start, kv_chunk), h0:h1]
            # Q.K^T contracting last dims directly (no transposed K tile),
            # batched over the block's batch dim.
            scores = lax.dot_general(
                qh, kc, (((2,), (2,)), ((0,), (0,))),
                preferred_element_type=jnp.float32)               # (Bt, S, kc)
            m_new = jnp.maximum(m, jnp.max(scores, axis=-1, keepdims=True))
            alpha = jnp.exp(m - m_new)
            p = jnp.exp(scores - m_new)
            l_new = alpha * l + jnp.sum(p, axis=-1, keepdims=True)
            acc_new = alpha * acc + lax.dot_general(
                p.astype(jnp.bfloat16), vc, (((2,), (1,)), ((0,), (0,))),
                preferred_element_type=jnp.float32)               # (Bt, S, Hd)
            return m_new, l_new, acc_new

        m0 = jnp.full((bt, s_len, 1), -jnp.inf, jnp.float32)
        l0 = jnp.zeros((bt, s_len, 1), jnp.float32)
        a0 = jnp.zeros((bt, s_len, hd), jnp.float32)
        m, l, acc = lax.fori_loop(0, n_kv, kv_body, (m0, l0, a0))

        # Write this head's context into the shared scratch slab (no concat).
        ctx_sc[:, :, h0:h1] = acc * pl.reciprocal(l, approx=True)

    ctx = ctx_sc[...].reshape(rows, d_model).astype(jnp.bfloat16)
    # Single (D, D) output projection: head-sum happens in the MXU accumulator.
    x = x + jnp.dot(ctx, wo_ref[...], preferred_element_type=jnp.float32)

    # ---------------- GLU feed-forward (pre-LN, SwiGLU) ----------------
    f_in = _layernorm(x, ln2_g_ref[...], ln2_b_ref[...]).astype(jnp.bfloat16)
    gu = jnp.dot(f_in, wgu_ref[...],
                 preferred_element_type=jnp.float32)              # (rows, 2F)
    f_hidden = gu.shape[-1] // 2
    h_sw = jax.nn.silu(gu[:, :f_hidden]) * gu[:, f_hidden:]
    x = x + jnp.dot(h_sw.astype(jnp.bfloat16), wd_ref[...],
                    preferred_element_type=jnp.float32)

    o_ref[...] = x.reshape(bt, s_len, d_model).astype(o_ref.dtype)


def make_rope_tables(positions, head_dim, num_heads):
    """(S,) positions -> full-width (S, D) cos/sin tables (halves duplicated,
    tiled over heads) so RoPE is a lane-dense elementwise op on (rows, D)."""
    half = head_dim // 2
    inv_freq = 1.0 / (10000.0 ** (jnp.arange(half, dtype=jnp.float32) / half))
    ang = positions.astype(jnp.float32)[:, None] * inv_freq          # (S, half)
    cos = jnp.concatenate([jnp.cos(ang), jnp.cos(ang)], axis=-1)     # (S, Hd)
    sin = jnp.concatenate([jnp.sin(ang), jnp.sin(ang)], axis=-1)
    return jnp.tile(cos, (1, num_heads)), jnp.tile(sin, (1, num_heads))


def make_rotate_half_matrix(d_model, head_dim):
    """(D, D) block-diagonal signed permutation: (q @ P) == rotate_half(q)
    per head, i.e. out[:half] = -in[half:], out[half:] = in[:half]."""
    half = head_dim // 2
    idx = jnp.arange(half)
    blk = jnp.zeros((head_dim, head_dim), jnp.float32)
    blk = blk.at[idx + half, idx].set(-1.0)
    blk = blk.at[idx, idx + half].set(1.0)
    n_heads = d_model // head_dim
    return jnp.kron(jnp.eye(n_heads, dtype=jnp.float32), blk).astype(jnp.bfloat16)


def _pick_batch_tile(batch, seq, target_rows=256):
    """Fold batch into the matmul M dimension: pick Bt so Bt*S ~ target rows."""
    bt = max(1, min(batch, target_rows // max(seq, 1)))
    while batch % bt:
        bt -= 1
    return bt


def _pick_vmem_limit():
    """128 MiB VMEM parts (v5e/v6e) -> ~80 MiB limit; 64 MiB parts (v7x) -> 40 MiB."""
    cap = 64 * 1024 * 1024
    try:
        cap = pltpu.get_tpu_info().vmem_capacity_bytes
    except Exception:
        pass
    return min(int(cap * 5 // 8), 100 * 1024 * 1024)


def transformer_layer(x, positions, params, num_heads, kv_chunk=512,
                      batch_tile=None):
    B, S, D = x.shape
    assert D % num_heads == 0
    Hd = D // num_heads
    assert Hd % 2 == 0
    F2 = params['wgu'].shape[1]            # 2 * ffn_size

    Bt = _pick_batch_tile(B, S) if batch_tile is None else batch_tile
    assert B % Bt == 0
    rows = Bt * S

    kv = min(kv_chunk, S)
    while S % kv:
        kv //= 2

    # TODO(synk): positions assumed identical across the batch (as in the demo);
    # pass per-batch tables with a (b, 0) index_map otherwise.
    cos, sin = make_rope_tables(positions, Hd, num_heads)          # (S, D)
    cosf = jnp.tile(cos, (Bt, 1))                                  # (rows, D)
    sinf = jnp.tile(sin, (Bt, 1))
    rot_p = make_rotate_half_matrix(D, Hd)                         # (D, D) bf16

    kernel = functools.partial(transformer_layer_kernel,
                               num_heads=num_heads, head_dim=Hd, kv_chunk=kv)

    def rep(shape):
        # Whole-array block; block index never changes across the batch grid, so
        # weights/tables are DMA'd once and stay VMEM-resident.
        # TODO(synk): single-buffer these (pipeline_mode) at production sizes.
        return pl.BlockSpec(shape, lambda b: (0, 0))

    return pl.pallas_call(
        kernel,
        out_shape=jax.ShapeDtypeStruct((B, S, D), x.dtype),
        grid_spec=pltpu.PrefetchScalarGridSpec(
            num_scalar_prefetch=0,
            grid=(B // Bt,),
            in_specs=[
                pl.BlockSpec((Bt, S, D), lambda b: (b, 0, 0)),   # x
                rep((rows, D)), rep((rows, D)),                  # cos, sin
                rep((D, D)),                                     # rotate-half P
                rep((1, D)), rep((1, D)),                        # ln1 gamma/beta
                rep((D, 3 * D)),                                 # fused W_qkv (bf16)
                rep((D, D)),                                     # W_o (bf16)
                rep((1, D)), rep((1, D)),                        # ln2 gamma/beta
                rep((D, F2)),                                    # fused W_gate|up
                rep((F2 // 2, D)),                               # W_down (bf16)
            ],
            out_specs=pl.BlockSpec((Bt, S, D), lambda b: (b, 0, 0)),
            scratch_shapes=[
                pltpu.VMEM((Bt, S, D), jnp.bfloat16),   # q (RoPE'd, pre-scaled)
                pltpu.VMEM((Bt, S, D), jnp.bfloat16),   # k (RoPE'd)
                pltpu.VMEM((Bt, S, D), jnp.bfloat16),   # v
                pltpu.VMEM((Bt, S, D), jnp.float32),    # per-head attention ctx
            ]),
        compiler_params=pltpu.CompilerParams(
            dimension_semantics=("parallel",),
            vmem_limit_bytes=_pick_vmem_limit(),
        ),
    )(x, cosf, sinf, rot_p,
      params['ln1_g'], params['ln1_b'], params['wqkv'], params['wo'],
      params['ln2_g'], params['ln2_b'], params['wgu'], params['wd'])


def reference(x, positions, params, num_heads):
    """Pure-JAX (f32) reference mirroring the PyTorch forward semantics."""
    B, S, D = x.shape
    H = num_heads
    Hd = D // H
    half = Hd // 2
    f32 = jnp.float32
    wqkv = params['wqkv'].astype(f32)
    wo = params['wo'].astype(f32)
    wgu = params['wgu'].astype(f32)
    wd = params['wd'].astype(f32)

    inv_freq = 1.0 / (10000.0 ** (jnp.arange(half, dtype=f32) / half))
    ang = positions.astype(f32)[:, None] * inv_freq
    cos, sin = jnp.cos(ang), jnp.sin(ang)                     # (S, half)

    def ln(t, g, b, eps=1e-5):
        mu = jnp.mean(t, axis=-1, keepdims=True)
        var = jnp.mean((t - mu) ** 2, axis=-1, keepdims=True)
        return (t - mu) * lax.rsqrt(var + eps) * g + b

    a = ln(x, params['ln1_g'], params['ln1_b'])
    qkv = a @ wqkv
    q = qkv[..., 0 * D:1 * D].reshape(B, S, H, Hd)
    k = qkv[..., 1 * D:2 * D].reshape(B, S, H, Hd)
    v = qkv[..., 2 * D:3 * D].reshape(B, S, H, Hd)

    def rope(t):
        t1, t2 = t[..., :half], t[..., half:]
        c = cos[None, :, None, :]
        s = sin[None, :, None, :]
        return jnp.concatenate([t1 * c - t2 * s, t2 * c + t1 * s], axis=-1)

    q, k = rope(q), rope(k)
    scores = jnp.einsum('bshf,bthf->bhst', q, k) / (Hd ** 0.5)
    p = jax.nn.softmax(scores, axis=-1)
    ctx = jnp.einsum('bhst,bthf->bshf', p, v).reshape(B, S, D)
    x = x + ctx @ wo

    f = ln(x, params['ln2_g'], params['ln2_b'])
    gu = f @ wgu
    F = gu.shape[-1] // 2
    h = jax.nn.silu(gu[..., :F]) * gu[..., F:]
    return x + h @ wd


if __name__ == "__main__":
    B, S, D, H, F = 2, 8, 64, 4, 128
    f32, bf16 = jnp.float32, jnp.bfloat16

    key = jax.random.PRNGKey(0)
    ks = jax.random.split(key, 10)
    init = lambda k, shape: jax.random.normal(k, shape, f32) * 0.02

    params = dict(
        ln1_g=1.0 + 0.1 * jax.random.normal(ks[0], (1, D), f32),
        ln1_b=0.1 * jax.random.normal(ks[1], (1, D), f32),
        wqkv=init(ks[2], (D, 3 * D)).astype(bf16),
        wo=init(ks[3], (D, D)).astype(bf16),
        ln2_g=1.0 + 0.1 * jax.random.normal(ks[4], (1, D), f32),
        ln2_b=0.1 * jax.random.normal(ks[5], (1, D), f32),
        wgu=init(ks[6], (D, 2 * F)).astype(bf16),
        wd=init(ks[7], (F, D)).astype(bf16),
    )

    x = jax.random.normal(ks[8], (B, S, D), f32)
    positions = jnp.arange(S, dtype=jnp.int32)

    out = transformer_layer(x, positions, params, num_heads=H)
    out = jax.block_until_ready(out)

    ref = reference(x, positions, params, num_heads=H)
    assert out.shape == (B, S, D)
    err = float(jnp.max(jnp.abs(out - ref)))
    assert err < 1e-2, f"mismatch vs reference: max abs err {err}"

    print("KERNEL_OK")
</pallas_src>

<mosaic_0001>
module attributes {stable_mosaic.version = 11 : i64} {
  func.func @transformer_layer_kernel(%arg0: i32, %arg1: memref<2x8x64xf32, #tpu.memory_space<vmem>>, %arg2: memref<16x64xf32, #tpu.memory_space<vmem>>, %arg3: memref<16x64xf32, #tpu.memory_space<vmem>>, %arg4: memref<64x64xbf16, #tpu.memory_space<vmem>>, %arg5: memref<1x64xf32, #tpu.memory_space<vmem>>, %arg6: memref<1x64xf32, #tpu.memory_space<vmem>>, %arg7: memref<64x192xbf16, #tpu.memory_space<vmem>>, %arg8: memref<64x64xbf16, #tpu.memory_space<vmem>>, %arg9: memref<1x64xf32, #tpu.memory_space<vmem>>, %arg10: memref<1x64xf32, #tpu.memory_space<vmem>>, %arg11: memref<64x256xbf16, #tpu.memory_space<vmem>>, %arg12: memref<128x64xbf16, #tpu.memory_space<vmem>>, %arg13: memref<2x8x64xf32, #tpu.memory_space<vmem>>, %arg14: memref<2x8x64xbf16, #tpu.memory_space<vmem>>, %arg15: memref<2x8x64xbf16, #tpu.memory_space<vmem>>, %arg16: memref<2x8x64xbf16, #tpu.memory_space<vmem>>, %arg17: memref<2x8x64xf32, #tpu.memory_space<vmem>>) attributes {dimension_semantics = [#tpu.dimension_semantics<parallel>], iteration_bounds = array<i64: 1>, scalar_prefetch = 0 : i64, scratch_operands = 4 : i64, tpu.core_type = #tpu.core_type<tc>, window_params = [{transform_indices = @transform_0, window_bounds = array<i64: 2, 8, 64>}, {pipeline_mode = #tpu.pipeline_mode<synchronous>, transform_indices = @transform_1, window_bounds = array<i64: 16, 64>}, {pipeline_mode = #tpu.pipeline_mode<synchronous>, transform_indices = @transform_2, window_bounds = array<i64: 16, 64>}, {pipeline_mode = #tpu.pipeline_mode<synchronous>, transform_indices = @transform_3, window_bounds = array<i64: 64, 64>}, {pipeline_mode = #tpu.pipeline_mode<synchronous>, transform_indices = @transform_4, window_bounds = array<i64: 1, 64>}, {pipeline_mode = #tpu.pipeline_mode<synchronous>, transform_indices = @transform_5, window_bounds = array<i64: 1, 64>}, {pipeline_mode = #tpu.pipeline_mode<synchronous>, transform_indices = @transform_6, window_bounds = array<i64: 64, 192>}, {pipeline_mode = #tpu.pipeline_mode<synchronous>, transform_indices = @transform_7, window_bounds = array<i64: 64, 64>}, {pipeline_mode = #tpu.pipeline_mode<synchronous>, transform_indices = @transform_8, window_bounds = array<i64: 1, 64>}, {pipeline_mode = #tpu.pipeline_mode<synchronous>, transform_indices = @transform_9, window_bounds = array<i64: 1, 64>}, {pipeline_mode = #tpu.pipeline_mode<synchronous>, transform_indices = @transform_10, window_bounds = array<i64: 64, 256>}, {pipeline_mode = #tpu.pipeline_mode<synchronous>, transform_indices = @transform_11, window_bounds = array<i64: 128, 64>}, {transform_indices = @transform_12, window_bounds = array<i64: 2, 8, 64>}]} {
    %c0 = arith.constant 0 : index
    %c0_0 = arith.constant 0 : index
    %c0_1 = arith.constant 0 : index
    %0 = vector.load %arg1[%c0, %c0_0, %c0_1] : memref<2x8x64xf32, #tpu.memory_space<vmem>>, vector<2x8x64xf32>
    %1 = vector.shape_cast %0 : vector<2x8x64xf32> to vector<16x64xf32>
    %c0_2 = arith.constant 0 : index
    %c0_3 = arith.constant 0 : index
    %2 = vector.load %arg2[%c0_2, %c0_3] : memref<16x64xf32, #tpu.memory_space<vmem>>, vector<16x64xf32>
    %c0_4 = arith.constant 0 : index
    %c0_5 = arith.constant 0 : index
    %3 = vector.load %arg3[%c0_4, %c0_5] : memref<16x64xf32, #tpu.memory_space<vmem>>, vector<16x64xf32>
    %c0_6 = arith.constant 0 : index
    %c0_7 = arith.constant 0 : index
    %4 = vector.load %arg5[%c0_6, %c0_7] : memref<1x64xf32, #tpu.memory_space<vmem>>, vector<1x64xf32>
    %c0_8 = arith.constant 0 : index
    %c0_9 = arith.constant 0 : index
    %5 = vector.load %arg6[%c0_8, %c0_9] : memref<1x64xf32, #tpu.memory_space<vmem>>, vector<1x64xf32>
    %cst = arith.constant dense<0.000000e+00> : vector<16xf32>
    %6 = vector.multi_reduction <add>, %1, %cst [1] : vector<16x64xf32> to vector<16xf32>
    %7 = vector.shape_cast %6 : vector<16xf32> to vector<16x1xf32>
    %cst_10 = arith.constant 6.400000e+01 : f32
    %8 = vector.broadcast %cst_10 : f32 to vector<16x1xf32>
    %9 = arith.divf %7, %8 : vector<16x1xf32>
    %10 = arith.mulf %1, %1 : vector<16x64xf32>
    %cst_11 = arith.constant dense<0.000000e+00> : vector<16xf32>
    %11 = vector.multi_reduction <add>, %10, %cst_11 [1] : vector<16x64xf32> to vector<16xf32>
    %12 = vector.shape_cast %11 : vector<16xf32> to vector<16x1xf32>
    %cst_12 = arith.constant 6.400000e+01 : f32
    %13 = vector.broadcast %cst_12 : f32 to vector<16x1xf32>
    %14 = arith.divf %12, %13 : vector<16x1xf32>
    %15 = arith.mulf %9, %9 : vector<16x1xf32>
    %16 = arith.subf %14, %15 : vector<16x1xf32>
    %17 = vector.broadcast %9 : vector<16x1xf32> to vector<16x64xf32>
    %18 = arith.subf %1, %17 : vector<16x64xf32>
    %cst_13 = arith.constant 9.99999974E-6 : f32
    %19 = vector.broadcast %cst_13 : f32 to vector<16x1xf32>
    %20 = arith.addf %16, %19 : vector<16x1xf32>
    %21 = math.rsqrt %20 : vector<16x1xf32>
    %22 = vector.broadcast %21 : vector<16x1xf32> to vector<16x64xf32>
    %23 = arith.mulf %18, %22 : vector<16x64xf32>
    %24 = vector.broadcast %4 : vector<1x64xf32> to vector<16x64xf32>
    %25 = arith.mulf %23, %24 : vector<16x64xf32>
    %26 = vector.broadcast %5 : vector<1x64xf32> to vector<16x64xf32>
    %27 = arith.addf %25, %26 : vector<16x64xf32>
    %28 = arith.truncf %27 : vector<16x64xf32> to vector<16x64xbf16>
    %c0_14 = arith.constant 0 : index
    %c0_15 = arith.constant 0 : index
    %29 = vector.load %arg7[%c0_14, %c0_15] : memref<64x192xbf16, #tpu.memory_space<vmem>>, vector<64x192xbf16>
    %cst_16 = arith.constant dense<0.000000e+00> : vector<16x192xf32>
    %30 = tpu.matmul %28, %29, %cst_16 {dimension_numbers = #tpu.dot_dimension_numbers<[1], [0], [0], [1], [0, 0, 1, 1], [], []>} : vector<16x64xbf16>, vector<64x192xbf16>, vector<16x192xf32> -> vector<16x192xf32>
    %31 = vector.extract_strided_slice %30 {offsets = [0, 0], sizes = [16, 64], strides = [1, 1]} : vector<16x192xf32> to vector<16x64xf32>
    %32 = vector.extract_strided_slice %30 {offsets = [0, 64], sizes = [16, 64], strides = [1, 1]} : vector<16x192xf32> to vector<16x64xf32>
    %33 = vector.extract_strided_slice %30 {offsets = [0, 128], sizes = [16, 64], strides = [1, 1]} : vector<16x192xf32> to vector<16x64xf32>
    %34 = arith.truncf %31 : vector<16x64xf32> to vector<16x64xbf16>
    %c0_17 = arith.constant 0 : index
    %c0_18 = arith.constant 0 : index
    %35 = vector.load %arg4[%c0_17, %c0_18] : memref<64x64xbf16, #tpu.memory_space<vmem>>, vector<64x64xbf16>
    %cst_19 = arith.constant dense<0.000000e+00> : vector<16x64xf32>
    %36 = tpu.matmul %34, %35, %cst_19 {dimension_numbers = #tpu.dot_dimension_numbers<[1], [0], [0], [1], [0, 0, 1, 1], [], []>} : vector<16x64xbf16>, vector<64x64xbf16>, vector<16x64xf32> -> vector<16x64xf32>
    %37 = arith.truncf %32 : vector<16x64xf32> to vector<16x64xbf16>
    %c0_20 = arith.constant 0 : index
    %c0_21 = arith.constant 0 : index
    %38 = vector.load %arg4[%c0_20, %c0_21] : memref<64x64xbf16, #tpu.memory_space<vmem>>, vector<64x64xbf16>
    %cst_22 = arith.constant dense<0.000000e+00> : vector<16x64xf32>
    %39 = tpu.matmul %37, %38, %cst_22 {dimension_numbers = #tpu.dot_dimension_numbers<[1], [0], [0], [1], [0, 0, 1, 1], [], []>} : vector<16x64xbf16>, vector<64x64xbf16>, vector<16x64xf32> -> vector<16x64xf32>
    %40 = arith.mulf %31, %2 : vector<16x64xf32>
    %41 = arith.mulf %36, %3 : vector<16x64xf32>
    %42 = arith.addf %40, %41 : vector<16x64xf32>
    %cst_23 = arith.constant 2.500000e-01 : f32
    %43 = vector.broadcast %cst_23 : f32 to vector<16x64xf32>
    %44 = arith.mulf %42, %43 : vector<16x64xf32>
    %45 = vector.shape_cast %44 : vector<16x64xf32> to vector<2x8x64xf32>
    %46 = arith.truncf %45 : vector<2x8x64xf32> to vector<2x8x64xbf16>
    %c0_24 = arith.constant 0 : index
    %c0_25 = arith.constant 0 : index
    %c0_26 = arith.constant 0 : index
    %47 = vector.load %arg14[%c0_24, %c0_25, %c0_26] : memref<2x8x64xbf16, #tpu.memory_space<vmem>>, vector<2x8x64xbf16>
    tpu.vector_store %arg14[%c0_24, %c0_25, %c0_26], %46 {strides = array<i32>} : memref<2x8x64xbf16, #tpu.memory_space<vmem>>, vector<2x8x64xbf16>,
    %48 = arith.mulf %32, %2 : vector<16x64xf32>
    %49 = arith.mulf %39, %3 : vector<16x64xf32>
    %50 = arith.addf %48, %49 : vector<16x64xf32>
    %51 = vector.shape_cast %50 : vector<16x64xf32> to vector<2x8x64xf32>
    %52 = arith.truncf %51 : vector<2x8x64xf32> to vector<2x8x64xbf16>
    %c0_27 = arith.constant 0 : index
    %c0_28 = arith.constant 0 : index
    %c0_29 = arith.constant 0 : index
    %53 = vector.load %arg15[%c0_27, %c0_28, %c0_29] : memref<2x8x64xbf16, #tpu.memory_space<vmem>>, vector<2x8x64xbf16>
    tpu.vector_store %arg15[%c0_27, %c0_28, %c0_29], %52 {strides = array<i32>} : memref<2x8x64xbf16, #tpu.memory_space<vmem>>, vector<2x8x64xbf16>,
    %54 = vector.shape_cast %33 : vector<16x64xf32> to vector<2x8x64xf32>
    %55 = arith.truncf %54 : vector<2x8x64xf32> to vector<2x8x64xbf16>
    %c0_30 = arith.constant 0 : index
    %c0_31 = arith.constant 0 : index
    %c0_32 = arith.constant 0 : index
    %56 = vector.load %arg16[%c0_30, %c0_31, %c0_32] : memref<2x8x64xbf16, #tpu.memory_space<vmem>>, vector<2x8x64xbf16>
    tpu.vector_store %arg16[%c0_30, %c0_31, %c0_32], %55 {strides = array<i32>} : memref<2x8x64xbf16, #tpu.memory_space<vmem>>, vector<2x8x64xbf16>,
    %c0_33 = arith.constant 0 : index
    %c0_34 = arith.constant 0 : index
    %c0_35 = arith.constant 0 : index
    %57 = vector.load %arg14[%c0_33, %c0_34, %c0_35] : memref<2x8x64xbf16, #tpu.memory_space<vmem>>, vector<2x8x16xbf16>
    %cst_36 = arith.constant 0xFF800000 : f32
    %58 = vector.broadcast %cst_36 : f32 to vector<2x8x1xf32>
    %cst_37 = arith.constant 0.000000e+00 : f32
    %59 = vector.broadcast %cst_37 : f32 to vector<2x8x1xf32>
    %cst_38 = arith.constant 0.000000e+00 : f32
    %60 = vector.broadcast %cst_38 : f32 to vector<2x8x16xf32>
    %c0_i32 = arith.constant 0 : i32
    %c8_i32 = arith.constant 8 : i32
    %61 = arith.muli %c0_i32, %c8_i32 : i32
    %62 = tpu.assume_multiple %61, 8 : i32
    %c0_39 = arith.constant 0 : index
    %63 = arith.index_cast %62 : i32 to index
    %c0_40 = arith.constant 0 : index
    %64 = vector.load %arg15[%c0_39, %63, %c0_40] : memref<2x8x64xbf16, #tpu.memory_space<vmem>>, vector<2x8x16xbf16>
    %c0_41 = arith.constant 0 : index
    %65 = arith.index_cast %62 : i32 to index
    %c0_42 = arith.constant 0 : index
    %66 = vector.load %arg16[%c0_41, %65, %c0_42] : memref<2x8x64xbf16, #tpu.memory_space<vmem>>, vector<2x8x16xbf16>
    %cst_43 = arith.constant dense<0.000000e+00> : vector<2x8x8xf32>
    %67 = tpu.matmul %57, %64, %cst_43 {dimension_numbers = #tpu.dot_dimension_numbers<[2], [2], [1], [1], [0, 0, 0, 1, 1, 1], [0], [0]>} : vector<2x8x16xbf16>, vector<2x8x16xbf16>, vector<2x8x8xf32> -> vector<2x8x8xf32>
    %cst_44 = arith.constant dense<0xFF800000> : vector<2x8xf32>
    %68 = vector.multi_reduction <maximumf>, %67, %cst_44 [2] : vector<2x8x8xf32> to vector<2x8xf32>
    %69 = vector.shape_cast %68 : vector<2x8xf32> to vector<2x8x1xf32>
    %70 = arith.maximumf %58, %69 : vector<2x8x1xf32>
    %71 = arith.subf %58, %70 : vector<2x8x1xf32>
    %72 = math.exp %71 : vector<2x8x1xf32>
    %73 = vector.broadcast %70 : vector<2x8x1xf32> to vector<2x8x8xf32>
    %74 = arith.subf %67, %73 : vector<2x8x8xf32>
    %75 = math.exp %74 : vector<2x8x8xf32>
    %76 = arith.mulf %72, %59 : vector<2x8x1xf32>
    %cst_45 = arith.constant dense<0.000000e+00> : vector<2x8xf32>
    %77 = vector.multi_reduction <add>, %75, %cst_45 [2] : vector<2x8x8xf32> to vector<2x8xf32>
    %78 = vector.shape_cast %77 : vector<2x8xf32> to vector<2x8x1xf32>
    %79 = arith.addf %76, %78 : vector<2x8x1xf32>
    %80 = vector.broadcast %72 : vector<2x8x1xf32> to vector<2x8x16xf32>
    %81 = arith.mulf %80, %60 : vector<2x8x16xf32>
    %82 = arith.truncf %75 : vector<2x8x8xf32> to vector<2x8x8xbf16>
    %cst_46 = arith.constant dense<0.000000e+00> : vector<2x8x16xf32>
    %83 = tpu.matmul %82, %66, %cst_46 {dimension_numbers = #tpu.dot_dimension_numbers<[2], [1], [1], [2], [0, 0, 0, 1, 1, 2], [0], [0]>} : vector<2x8x8xbf16>, vector<2x8x16xbf16>, vector<2x8x16xf32> -> vector<2x8x16xf32>
    %84 = arith.addf %81, %83 : vector<2x8x16xf32>
    %c1_i32 = arith.constant 1 : i32
    %85 = tpu.reciprocal %79 {approx = true} : vector<2x8x1xf32> -> vector<2x8x1xf32>
    %86 = vector.broadcast %85 : vector<2x8x1xf32> to vector<2x8x16xf32>
    %87 = arith.mulf %84, %86 : vector<2x8x16xf32>
    %c0_47 = arith.constant 0 : index
    %c0_48 = arith.constant 0 : index
    %c0_49 = arith.constant 0 : index
    %88 = vector.load %arg17[%c0_47, %c0_48, %c0_49] : memref<2x8x64xf32, #tpu.memory_space<vmem>>, vector<2x8x16xf32>
    tpu.vector_store %arg17[%c0_47, %c0_48, %c0_49], %87 {strides = array<i32>} : memref<2x8x64xf32, #tpu.memory_space<vmem>>, vector<2x8x16xf32>,
    %c0_50 = arith.constant 0 : index
    %c0_51 = arith.constant 0 : index
    %c16 = arith.constant 16 : index
    %89 = vector.load %arg14[%c0_50, %c0_51, %c16] : memref<2x8x64xbf16, #tpu.memory_space<vmem>>, vector<2x8x16xbf16>
    %cst_52 = arith.constant 0xFF800000 : f32
    %90 = vector.broadcast %cst_52 : f32 to vector<2x8x1xf32>
    %cst_53 = arith.constant 0.000000e+00 : f32
    %91 = vector.broadcast %cst_53 : f32 to vector<2x8x1xf32>
    %cst_54 = arith.constant 0.000000e+00 : f32
    %92 = vector.broadcast %cst_54 : f32 to vector<2x8x16xf32>
    %c0_i32_55 = arith.constant 0 : i32
    %c8_i32_56 = arith.constant 8 : i32
    %93 = arith.muli %c0_i32_55, %c8_i32_56 : i32
    %94 = tpu.assume_multiple %93, 8 : i32
    %c0_57 = arith.constant 0 : index
    %95 = arith.index_cast %94 : i32 to index
    %c16_58 = arith.constant 16 : index
    %96 = vector.load %arg15[%c0_57, %95, %c16_58] : memref<2x8x64xbf16, #tpu.memory_space<vmem>>, vector<2x8x16xbf16>
    %c0_59 = arith.constant 0 : index
    %97 = arith.index_cast %94 : i32 to index
    %c16_60 = arith.constant 16 : index
    %98 = vector.load %arg16[%c0_59, %97, %c16_60] : memref<2x8x64xbf16, #tpu.memory_space<vmem>>, vector<2x8x16xbf16>
    %cst_61 = arith.constant dense<0.000000e+00> : vector<2x8x8xf32>
    %99 = tpu.matmul %89, %96, %cst_61 {dimension_numbers = #tpu.dot_dimension_numbers<[2], [2], [1], [1], [0, 0, 0, 1, 1, 1], [0], [0]>} : vector<2x8x16xbf16>, vector<2x8x16xbf16>, vector<2x8x8xf32> -> vector<2x8x8xf32>
    %cst_62 = arith.constant dense<0xFF800000> : vector<2x8xf32>
    %100 = vector.multi_reduction <maximumf>, %99, %cst_62 [2] : vector<2x8x8xf32> to vector<2x8xf32>
    %101 = vector.shape_cast %100 : vector<2x8xf32> to vector<2x8x1xf32>
    %102 = arith.maximumf %90, %101 : vector<2x8x1xf32>
    %103 = arith.subf %90, %102 : vector<2x8x1xf32>
    %104 = math.exp %103 : vector<2x8x1xf32>
    %105 = vector.broadcast %102 : vector<2x8x1xf32> to vector<2x8x8xf32>
    %106 = arith.subf %99, %105 : vector<2x8x8xf32>
    %107 = math.exp %106 : vector<2x8x8xf32>
    %108 = arith.mulf %104, %91 : vector<2x8x1xf32>
    %cst_63 = arith.constant dense<0.000000e+00> : vector<2x8xf32>
    %109 = vector.multi_reduction <add>, %107, %cst_63 [2] : vector<2x8x8xf32> to vector<2x8xf32>
    %110 = vector.shape_cast %109 : vector<2x8xf32> to vector<2x8x1xf32>
    %111 = arith.addf %108, %110 : vector<2x8x1xf32>
    %112 = vector.broadcast %104 : vector<2x8x1xf32> to vector<2x8x16xf32>
    %113 = arith.mulf %112, %92 : vector<2x8x16xf32>
    %114 = arith.truncf %107 : vector<2x8x8xf32> to vector<2x8x8xbf16>
    %cst_64 = arith.constant dense<0.000000e+00> : vector<2x8x16xf32>
    %115 = tpu.matmul %114, %98, %cst_64 {dimension_numbers = #tpu.dot_dimension_numbers<[2], [1], [1], [2], [0, 0, 0, 1, 1, 2], [0], [0]>} : vector<2x8x8xbf16>, vector<2x8x16xbf16>, vector<2x8x16xf32> -> vector<2x8x16xf32>
    %116 = arith.addf %113, %115 : vector<2x8x16xf32>
    %c1_i32_65 = arith.constant 1 : i32
    %117 = tpu.reciprocal %111 {approx = true} : vector<2x8x1xf32> -> vector<2x8x1xf32>
    %118 = vector.broadcast %117 : vector<2x8x1xf32> to vector<2x8x16xf32>
    %119 = arith.mulf %116, %118 : vector<2x8x16xf32>
    %c0_66 = arith.constant 0 : index
    %c0_67 = arith.constant 0 : index
    %c16_68 = arith.constant 16 : index
    %120 = vector.load %arg17[%c0_66, %c0_67, %c16_68] : memref<2x8x64xf32, #tpu.memory_space<vmem>>, vector<2x8x16xf32>
    tpu.vector_store %arg17[%c0_66, %c0_67, %c16_68], %119 {strides = array<i32>} : memref<2x8x64xf32, #tpu.memory_space<vmem>>, vector<2x8x16xf32>,
    %c0_69 = arith.constant 0 : index
    %c0_70 = arith.constant 0 : index
    %c32 = arith.constant 32 : index
    %121 = vector.load %arg14[%c0_69, %c0_70, %c32] : memref<2x8x64xbf16, #tpu.memory_space<vmem>>, vector<2x8x16xbf16>
    %cst_71 = arith.constant 0xFF800000 : f32
    %122 = vector.broadcast %cst_71 : f32 to vector<2x8x1xf32>
    %cst_72 = arith.constant 0.000000e+00 : f32
    %123 = vector.broadcast %cst_72 : f32 to vector<2x8x1xf32>
    %cst_73 = arith.constant 0.000000e+00 : f32
    %124 = vector.broadcast %cst_73 : f32 to vector<2x8x16xf32>
    %c0_i32_74 = arith.constant 0 : i32
    %c8_i32_75 = arith.constant 8 : i32
    %125 = arith.muli %c0_i32_74, %c8_i32_75 : i32
    %126 = tpu.assume_multiple %125, 8 : i32
    %c0_76 = arith.constant 0 : index
    %127 = arith.index_cast %126 : i32 to index
    %c32_77 = arith.constant 32 : index
    %128 = vector.load %arg15[%c0_76, %127, %c32_77] : memref<2x8x64xbf16, #tpu.memory_space<vmem>>, vector<2x8x16xbf16>
    %c0_78 = arith.constant 0 : index
    %129 = arith.index_cast %126 : i32 to index
    %c32_79 = arith.constant 32 : index
    %130 = vector.load %arg16[%c0_78, %129, %c32_79] : memref<2x8x64xbf16, #tpu.memory_space<vmem>>, vector<2x8x16xbf16>
    %cst_80 = arith.constant dense<0.000000e+00> : vector<2x8x8xf32>
    %131 = tpu.matmul %121, %128, %cst_80 {dimension_numbers = #tpu.dot_dimension_numbers<[2], [2], [1], [1], [0, 0, 0, 1, 1, 1], [0], [0]>} : vector<2x8x16xbf16>, vector<2x8x16xbf16>, vector<2x8x8xf32> -> vector<2x8x8xf32>
    %cst_81 = arith.constant dense<0xFF800000> : vector<2x8xf32>
    %132 = vector.multi_reduction <maximumf>, %131, %cst_81 [2] : vector<2x8x8xf32> to vector<2x8xf32>
    %133 = vector.shape_cast %132 : vector<2x8xf32> to vector<2x8x1xf32>
    %134 = arith.maximumf %122, %133 : vector<2x8x1xf32>
    %135 = arith.subf %122, %134 : vector<2x8x1xf32>
    %136 = math.exp %135 : vector<2x8x1xf32>
    %137 = vector.broadcast %134 : vector<2x8x1xf32> to vector<2x8x8xf32>
    %138 = arith.subf %131, %137 : vector<2x8x8xf32>
    %139 = math.exp %138 : vector<2x8x8xf32>
    %140 = arith.mulf %136, %123 : vector<2x8x1xf32>
    %cst_82 = arith.constant dense<0.000000e+00> : vector<2x8xf32>
    %141 = vector.multi_reduction <add>, %139, %cst_82 [2] : vector<2x8x8xf32> to vector<2x8xf32>
    %142 = vector.shape_cast %141 : vector<2x8xf32> to vector<2x8x1xf32>
    %143 = arith.addf %140, %142 : vector<2x8x1xf32>
    %144 = vector.broadcast %136 : vector<2x8x1xf32> to vector<2x8x16xf32>
    %145 = arith.mulf %144, %124 : vector<2x8x16xf32>
    %146 = arith.truncf %139 : vector<2x8x8xf32> to vector<2x8x8xbf16>
    %cst_83 = arith.constant dense<0.000000e+00> : vector<2x8x16xf32>
    %147 = tpu.matmul %146, %130, %cst_83 {dimension_numbers = #tpu.dot_dimension_numbers<[2], [1], [1], [2], [0, 0, 0, 1, 1, 2], [0], [0]>} : vector<2x8x8xbf16>, vector<2x8x16xbf16>, vector<2x8x16xf32> -> vector<2x8x16xf32>
    %148 = arith.addf %145, %147 : vector<2x8x16xf32>
    %c1_i32_84 = arith.constant 1 : i32
    %149 = tpu.reciprocal %143 {approx = true} : vector<2x8x1xf32> -> vector<2x8x1xf32>
    %150 = vector.broadcast %149 : vector<2x8x1xf32> to vector<2x8x16xf32>
    %151 = arith.mulf %148, %150 : vector<2x8x16xf32>
    %c0_85 = arith.constant 0 : index
    %c0_86 = arith.constant 0 : index
    %c32_87 = arith.constant 32 : index
    %152 = vector.load %arg17[%c0_85, %c0_86, %c32_87] : memref<2x8x64xf32, #tpu.memory_space<vmem>>, vector<2x8x16xf32>
    tpu.vector_store %arg17[%c0_85, %c0_86, %c32_87], %151 {strides = array<i32>} : memref<2x8x64xf32, #tpu.memory_space<vmem>>, vector<2x8x16xf32>,
    %c0_88 = arith.constant 0 : index
    %c0_89 = arith.constant 0 : index
    %c48 = arith.constant 48 : index
    %153 = vector.load %arg14[%c0_88, %c0_89, %c48] : memref<2x8x64xbf16, #tpu.memory_space<vmem>>, vector<2x8x16xbf16>
    %cst_90 = arith.constant 0xFF800000 : f32
    %154 = vector.broadcast %cst_90 : f32 to vector<2x8x1xf32>
    %cst_91 = arith.constant 0.000000e+00 : f32
    %155 = vector.broadcast %cst_91 : f32 to vector<2x8x1xf32>
    %cst_92 = arith.constant 0.000000e+00 : f32
    %156 = vector.broadcast %cst_92 : f32 to vector<2x8x16xf32>
    %c0_i32_93 = arith.constant 0 : i32
    %c8_i32_94 = arith.constant 8 : i32
    %157 = arith.muli %c0_i32_93, %c8_i32_94 : i32
    %158 = tpu.assume_multiple %157, 8 : i32
    %c0_95 = arith.constant 0 : index
    %159 = arith.index_cast %158 : i32 to index
    %c48_96 = arith.constant 48 : index
    %160 = vector.load %arg15[%c0_95, %159, %c48_96] : memref<2x8x64xbf16, #tpu.memory_space<vmem>>, vector<2x8x16xbf16>
    %c0_97 = arith.constant 0 : index
    %161 = arith.index_cast %158 : i32 to index
    %c48_98 = arith.constant 48 : index
    %162 = vector.load %arg16[%c0_97, %161, %c48_98] : memref<2x8x64xbf16, #tpu.memory_space<vmem>>, vector<2x8x16xbf16>
    %cst_99 = arith.constant dense<0.000000e+00> : vector<2x8x8xf32>
    %163 = tpu.matmul %153, %160, %cst_99 {dimension_numbers = #tpu.dot_dimension_numbers<[2], [2], [1], [1], [0, 0, 0, 1, 1, 1], [0], [0]>} : vector<2x8x16xbf16>, vector<2x8x16xbf16>, vector<2x8x8xf32> -> vector<2x8x8xf32>
    %cst_100 = arith.constant dense<0xFF800000> : vector<2x8xf32>
    %164 = vector.multi_reduction <maximumf>, %163, %cst_100 [2] : vector<2x8x8xf32> to vector<2x8xf32>
    %165 = vector.shape_cast %164 : vector<2x8xf32> to vector<2x8x1xf32>
    %166 = arith.maximumf %154, %165 : vector<2x8x1xf32>
    %167 = arith.subf %154, %166 : vector<2x8x1xf32>
    %168 = math.exp %167 : vector<2x8x1xf32>
    %169 = vector.broadcast %166 : vector<2x8x1xf32> to vector<2x8x8xf32>
    %170 = arith.subf %163, %169 : vector<2x8x8xf32>
    %171 = math.exp %170 : vector<2x8x8xf32>
    %172 = arith.mulf %168, %155 : vector<2x8x1xf32>
    %cst_101 = arith.constant dense<0.000000e+00> : vector<2x8xf32>
    %173 = vector.multi_reduction <add>, %171, %cst_101 [2] : vector<2x8x8xf32> to vector<2x8xf32>
    %174 = vector.shape_cast %173 : vector<2x8xf32> to vector<2x8x1xf32>
    %175 = arith.addf %172, %174 : vector<2x8x1xf32>
    %176 = vector.broadcast %168 : vector<2x8x1xf32> to vector<2x8x16xf32>
    %177 = arith.mulf %176, %156 : vector<2x8x16xf32>
    %178 = arith.truncf %171 : vector<2x8x8xf32> to vector<2x8x8xbf16>
    %cst_102 = arith.constant dense<0.000000e+00> : vector<2x8x16xf32>
    %179 = tpu.matmul %178, %162, %cst_102 {dimension_numbers = #tpu.dot_dimension_numbers<[2], [1], [1], [2], [0, 0, 0, 1, 1, 2], [0], [0]>} : vector<2x8x8xbf16>, vector<2x8x16xbf16>, vector<2x8x16xf32> -> vector<2x8x16xf32>
    %180 = arith.addf %177, %179 : vector<2x8x16xf32>
    %c1_i32_103 = arith.constant 1 : i32
    %181 = tpu.reciprocal %175 {approx = true} : vector<2x8x1xf32> -> vector<2x8x1xf32>
    %182 = vector.broadcast %181 : vector<2x8x1xf32> to vector<2x8x16xf32>
    %183 = arith.mulf %180, %182 : vector<2x8x16xf32>
    %c0_104 = arith.constant 0 : index
    %c0_105 = arith.constant 0 : index
    %c48_106 = arith.constant 48 : index
    %184 = vector.load %arg17[%c0_104, %c0_105, %c48_106] : memref<2x8x64xf32, #tpu.memory_space<vmem>>, vector<2x8x16xf32>
    tpu.vector_store %arg17[%c0_104, %c0_105, %c48_106], %183 {strides = array<i32>} : memref<2x8x64xf32, #tpu.memory_space<vmem>>, vector<2x8x16xf32>,
    %c0_107 = arith.constant 0 : index
    %c0_108 = arith.constant 0 : index
    %c0_109 = arith.constant 0 : index
    %185 = vector.load %arg17[%c0_107, %c0_108, %c0_109] : memref<2x8x64xf32, #tpu.memory_space<vmem>>, vector<2x8x64xf32>
    %186 = vector.shape_cast %185 : vector<2x8x64xf32> to vector<16x64xf32>
    %187 = arith.truncf %186 : vector<16x64xf32> to vector<16x64xbf16>
    %c0_110 = arith.constant 0 : index
    %c0_111 = arith.constant 0 : index
    %188 = vector.load %arg8[%c0_110, %c0_111] : memref<64x64xbf16, #tpu.memory_space<vmem>>, vector<64x64xbf16>
    %cst_112 = arith.constant dense<0.000000e+00> : vector<16x64xf32>
    %189 = tpu.matmul %187, %188, %cst_112 {dimension_numbers = #tpu.dot_dimension_numbers<[1], [0], [0], [1], [0, 0, 1, 1], [], []>} : vector<16x64xbf16>, vector<64x64xbf16>, vector<16x64xf32> -> vector<16x64xf32>
    %190 = arith.addf %1, %189 : vector<16x64xf32>
    %c0_113 = arith.constant 0 : index
    %c0_114 = arith.constant 0 : index
    %191 = vector.load %arg9[%c0_113, %c0_114] : memref<1x64xf32, #tpu.memory_space<vmem>>, vector<1x64xf32>
    %c0_115 = arith.constant 0 : index
    %c0_116 = arith.constant 0 : index
    %192 = vector.load %arg10[%c0_115, %c0_116] : memref<1x64xf32, #tpu.memory_space<vmem>>, vector<1x64xf32>
    %cst_117 = arith.constant dense<0.000000e+00> : vector<16xf32>
    %193 = vector.multi_reduction <add>, %190, %cst_117 [1] : vector<16x64xf32> to vector<16xf32>
    %194 = vector.shape_cast %193 : vector<16xf32> to vector<16x1xf32>
    %cst_118 = arith.constant 6.400000e+01 : f32
    %195 = vector.broadcast %cst_118 : f32 to vector<16x1xf32>
    %196 = arith.divf %194, %195 : vector<16x1xf32>
    %197 = arith.mulf %190, %190 : vector<16x64xf32>
    %cst_119 = arith.constant dense<0.000000e+00> : vector<16xf32>
    %198 = vector.multi_reduction <add>, %197, %cst_119 [1] : vector<16x64xf32> to vector<16xf32>
    %199 = vector.shape_cast %198 : vector<16xf32> to vector<16x1xf32>
    %cst_120 = arith.constant 6.400000e+01 : f32
    %200 = vector.broadcast %cst_120 : f32 to vector<16x1xf32>
    %201 = arith.divf %199, %200 : vector<16x1xf32>
    %202 = arith.mulf %196, %196 : vector<16x1xf32>
    %203 = arith.subf %201, %202 : vector<16x1xf32>
    %204 = vector.broadcast %196 : vector<16x1xf32> to vector<16x64xf32>
    %205 = arith.subf %190, %204 : vector<16x64xf32>
    %cst_121 = arith.constant 9.99999974E-6 : f32
    %206 = vector.broadcast %cst_121 : f32 to vector<16x1xf32>
    %207 = arith.addf %203, %206 : vector<16x1xf32>
    %208 = math.rsqrt %207 : vector<16x1xf32>
    %209 = vector.broadcast %208 : vector<16x1xf32> to vector<16x64xf32>
    %210 = arith.mulf %205, %209 : vector<16x64xf32>
    %211 = vector.broadcast %191 : vector<1x64xf32> to vector<16x64xf32>
    %212 = arith.mulf %210, %211 : vector<16x64xf32>
    %213 = vector.broadcast %192 : vector<1x64xf32> to vector<16x64xf32>
    %214 = arith.addf %212, %213 : vector<16x64xf32>
    %215 = arith.truncf %214 : vector<16x64xf32> to vector<16x64xbf16>
    %c0_122 = arith.constant 0 : index
    %c0_123 = arith.constant 0 : index
    %216 = vector.load %arg11[%c0_122, %c0_123] : memref<64x256xbf16, #tpu.memory_space<vmem>>, vector<64x256xbf16>
    %cst_124 = arith.constant dense<0.000000e+00> : vector<16x256xf32>
    %217 = tpu.matmul %215, %216, %cst_124 {dimension_numbers = #tpu.dot_dimension_numbers<[1], [0], [0], [1], [0, 0, 1, 1], [], []>} : vector<16x64xbf16>, vector<64x256xbf16>, vector<16x256xf32> -> vector<16x256xf32>
    %218 = vector.extract_strided_slice %217 {offsets = [0, 0], sizes = [16, 128], strides = [1, 1]} : vector<16x256xf32> to vector<16x128xf32>
    %219 = arith.negf %218 : vector<16x128xf32>
    %220 = math.exp %219 : vector<16x128xf32>
    %cst_125 = arith.constant 1.000000e+00 : f32
    %221 = vector.broadcast %cst_125 : f32 to vector<16x128xf32>
    %222 = arith.addf %221, %220 : vector<16x128xf32>
    %223 = arith.divf %221, %222 : vector<16x128xf32>
    %224 = arith.mulf %218, %223 : vector<16x128xf32>
    %225 = vector.extract_strided_slice %217 {offsets = [0, 128], sizes = [16, 128], strides = [1, 1]} : vector<16x256xf32> to vector<16x128xf32>
    %226 = arith.mulf %224, %225 : vector<16x128xf32>
    %227 = arith.truncf %226 : vector<16x128xf32> to vector<16x128xbf16>
    %c0_126 = arith.constant 0 : index
    %c0_127 = arith.constant 0 : index
    %228 = vector.load %arg12[%c0_126, %c0_127] : memref<128x64xbf16, #tpu.memory_space<vmem>>, vector<128x64xbf16>
    %cst_128 = arith.constant dense<0.000000e+00> : vector<16x64xf32>
    %229 = tpu.matmul %227, %228, %cst_128 {dimension_numbers = #tpu.dot_dimension_numbers<[1], [0], [0], [1], [0, 0, 1, 1], [], []>} : vector<16x128xbf16>, vector<128x64xbf16>, vector<16x64xf32> -> vector<16x64xf32>
    %230 = arith.addf %190, %229 : vector<16x64xf32>
    %231 = vector.shape_cast %230 : vector<16x64xf32> to vector<2x8x64xf32>
    %c0_129 = arith.constant 0 : index
    %c0_130 = arith.constant 0 : index
    %c0_131 = arith.constant 0 : index
    %232 = vector.load %arg13[%c0_129, %c0_130, %c0_131] : memref<2x8x64xf32, #tpu.memory_space<vmem>>, vector<2x8x64xf32>
    tpu.vector_store %arg13[%c0_129, %c0_130, %c0_131], %231 {strides = array<i32>} : memref<2x8x64xf32, #tpu.memory_space<vmem>>, vector<2x8x64xf32>,
    return
  }
  func.func @transform_0(%arg0: i32) -> (i32, i32, i32) {
    %c0_i32 = arith.constant 0 : i32
    %c0_i32_0 = arith.constant 0 : i32
    %c0_i32_1 = arith.constant 0 : i32
    return %arg0, %c0_i32, %c0_i32_0 : i32, i32, i32
  }
  func.func @transform_1(%arg0: i32) -> (i32, i32) {
    %c0_i32 = arith.constant 0 : i32
    %c0_i32_0 = arith.constant 0 : i32
    %c0_i32_1 = arith.constant 0 : i32
    return %c0_i32, %c0_i32_0 : i32, i32
  }
  func.func @transform_2(%arg0: i32) -> (i32, i32) {
    %c0_i32 = arith.constant 0 : i32
    %c0_i32_0 = arith.constant 0 : i32
    %c0_i32_1 = arith.constant 0 : i32
    return %c0_i32, %c0_i32_0 : i32, i32
  }
  func.func @transform_3(%arg0: i32) -> (i32, i32) {
    %c0_i32 = arith.constant 0 : i32
    %c0_i32_0 = arith.constant 0 : i32
    %c0_i32_1 = arith.constant 0 : i32
    return %c0_i32, %c0_i32_0 : i32, i32
  }
  func.func @transform_4(%arg0: i32) -> (i32, i32) {
    %c0_i32 = arith.constant 0 : i32
    %c0_i32_0 = arith.constant 0 : i32
    %c0_i32_1 = arith.constant 0 : i32
    return %c0_i32, %c0_i32_0 : i32, i32
  }
  func.func @transform_5(%arg0: i32) -> (i32, i32) {
    %c0_i32 = arith.constant 0 : i32
    %c0_i32_0 = arith.constant 0 : i32
    %c0_i32_1 = arith.constant 0 : i32
    return %c0_i32, %c0_i32_0 : i32, i32
  }
  func.func @transform_6(%arg0: i32) -> (i32, i32) {
    %c0_i32 = arith.constant 0 : i32
    %c0_i32_0 = arith.constant 0 : i32
    %c0_i32_1 = arith.constant 0 : i32
    return %c0_i32, %c0_i32_0 : i32, i32
  }
  func.func @transform_7(%arg0: i32) -> (i32, i32) {
    %c0_i32 = arith.constant 0 : i32
    %c0_i32_0 = arith.constant 0 : i32
    %c0_i32_1 = arith.constant 0 : i32
    return %c0_i32, %c0_i32_0 : i32, i32
  }
  func.func @transform_8(%arg0: i32) -> (i32, i32) {
    %c0_i32 = arith.constant 0 : i32
    %c0_i32_0 = arith.constant 0 : i32
    %c0_i32_1 = arith.constant 0 : i32
    return %c0_i32, %c0_i32_0 : i32, i32
  }
  func.func @transform_9(%arg0: i32) -> (i32, i32) {
    %c0_i32 = arith.constant 0 : i32
    %c0_i32_0 = arith.constant 0 : i32
    %c0_i32_1 = arith.constant 0 : i32
    return %c0_i32, %c0_i32_0 : i32, i32
  }
  func.func @transform_10(%arg0: i32) -> (i32, i32) {
    %c0_i32 = arith.constant 0 : i32
    %c0_i32_0 = arith.constant 0 : i32
    %c0_i32_1 = arith.constant 0 : i32
    return %c0_i32, %c0_i32_0 : i32, i32
  }
  func.func @transform_11(%arg0: i32) -> (i32, i32) {
    %c0_i32 = arith.constant 0 : i32
    %c0_i32_0 = arith.constant 0 : i32
    %c0_i32_1 = arith.constant 0 : i32
    return %c0_i32, %c0_i32_0 : i32, i32
  }
  func.func @transform_12(%arg0: i32) -> (i32, i32, i32) {
    %c0_i32 = arith.constant 0 : i32
    %c0_i32_0 = arith.constant 0 : i32
    %c0_i32_1 = arith.constant 0 : i32
    return %arg0, %c0_i32, %c0_i32_0 : i32, i32, i32
  }
}

</mosaic_0001>

<llo_original>
// kernel: tpu_custom_call.1
$region0: #{tpu_custom_call.1}
  #allocation0 [shape = 'u32[]', space=smem, size = 0x4, offset = 0x4, fixed_abs, tag = 'smem constant byte address 0x4 - core index']
  #allocation1 [shape = 'u32[144,128]{1,0:T(1,128)}', space=vmem, size = 0x12000, scoped, tag = 'internal scratch']
  #allocation2 [shape = 'bf16[2,8,64]{2,1,0:T(8,128)(2,1)}', space=vmem, size = 0x1000, scoped, tag = 'scratch operand']
  #allocation3 [shape = 'bf16[2,8,64]{2,1,0:T(8,128)(2,1)}', space=vmem, size = 0x1000, scoped, tag = 'scratch operand']
  #allocation4 [shape = 'bf16[2,8,64]{2,1,0:T(8,128)(2,1)}', space=vmem, size = 0x1000, scoped, tag = 'scratch operand']
  #allocation5 [shape = 'f32[2,8,64]{2,1,0:T(8,128)}', space=vmem, size = 0x2000, scoped, tag = 'scratch operand']
  %s0 = inlined_call_operand.hbm [shape: f32[2,8,64], index: 0, kind: input, shape index: {}]
  %s1 = inlined_call_operand.hbm [shape: f32[16,64], index: 1, kind: input, shape index: {}]
  %s2 = inlined_call_operand.hbm [shape: f32[16,64], index: 2, kind: input, shape index: {}]
  %s3 = inlined_call_operand.vmem [shape: bf16[64,64], index: 3, kind: input, shape index: {}]
  %s4 = inlined_call_operand.vmem [shape: f32[1,64], index: 4, kind: input, shape index: {}]
  %s5 = inlined_call_operand.vmem [shape: f32[1,64], index: 5, kind: input, shape index: {}]
  %s6 = inlined_call_operand.vmem [shape: bf16[64,192], index: 6, kind: input, shape index: {}]
  %s7 = inlined_call_operand.hbm [shape: bf16[64,64], index: 7, kind: input, shape index: {}]
  %s8 = inlined_call_operand.vmem [shape: f32[1,64], index: 8, kind: input, shape index: {}]
  %s9 = inlined_call_operand.vmem [shape: f32[1,64], index: 9, kind: input, shape index: {}]
  %s10 = inlined_call_operand.hbm [shape: bf16[64,256], index: 10, kind: input, shape index: {}]
  %s11 = inlined_call_operand.vmem [shape: bf16[128,64], index: 11, kind: input, shape index: {}]
  %s12 = inlined_call_operand.hbm [shape: f32[2,8,64], index: 12, kind: output, shape index: {}]
  %s13 = sld [smem:[#allocation0]]
  $region78: #{tpu_custom_call.1} parent=0
    _
  %s15 = ssub.s32 1, %s13
  %s16 = scalar_select 0, %s15, %s13
  $region1: #{tpu_custom_call.1} parent=0
    #allocation6 [shape = 'u8[8192]{0}', space=vmem, size = 0x2000, scoped, tag = 'input window, operand 0, single buffered']
    #allocation7 [shape = 's32[1]{0}', space=sflag, size = 0x4, scoped, tag = 'scoped memory for tpu_custom_call.1']
    #allocation8 [shape = 's32[1]{0}', space=sflag, size = 0x4, scoped, tag = 'scoped memory for tpu_custom_call.1']
    #allocation9 [shape = 'u8[8192]{0}', space=vmem, size = 0x2000, scoped, tag = 'input window, operand 1, single buffered']
    #allocation10 [shape = 's32[1]{0}', space=sflag, size = 0x4, scoped, tag = 'scoped memory for tpu_custom_call.1']
    #allocation11 [shape = 'u8[8192]{0}', space=vmem, size = 0x2000, scoped, tag = 'input window, operand 2, single buffered']
    #allocation12 [shape = 'u8[16384]{0}', space=vmem, size = 0x4000, scoped, tag = 'input window, operand 7, single buffered']
    #allocation13 [shape = 's32[1]{0}', space=sflag, size = 0x4, scoped, tag = 'scoped memory for tpu_custom_call.1']
    #allocation14 [shape = 'u8[32768]{0}', space=vmem, size = 0x8000, scoped, tag = 'input window, operand 10, single buffered']
    #allocation15 [shape = 'u8[8192]{0}', space=vmem, size = 0x2000, scoped, tag = 'output window, operand 0, single buffered']
    %17 = vsyncpa [#allocation7], 0
    %18 = vsyncpa [#allocation10], 0
    %19 = vsyncpa [#allocation13], 0
    %20 = vsyncpa [#allocation8], 0
    // Predicated region
    $region2: #{tpu_custom_call.1} parent=1 // pred_check
      _
    $region3: #{tpu_custom_call.1} parent=1 // pred_check_branch
      %22 = sbr.rel (0) target = $region5
    $region4: #{tpu_custom_call.1} parent=1 // pred_region
      %s24 = ssub.s32 256, 256
      %25 = vsyncadd [#allocation7], %s24
      %s26 = sshll.u32 [#allocation6], 4
      %s27 = int_to_ptr.vmem [resolvable:$true] %s26
      %32 = dma.hbm_to_vmem [thread:$0]  %s0, 256, %s27, [#allocation7], 128, 128, 8
    $region5: #{tpu_custom_call.1} parent=1 // pred_fallthru
      _
    // Predicated region
    $region6: #{tpu_custom_call.1} parent=1 // pred_check
      _
    $region7: #{tpu_custom_call.1} parent=1 // pred_check_branch
      %34 = sbr.rel (0) target = $region9
    $region8: #{tpu_custom_call.1} parent=1 // pred_region
      %s36 = ssub.s32 256, 256
      %37 = vsyncadd [#allocation10], %s36
      %s38 = sshll.u32 [#allocation9], 4
      %s39 = int_to_ptr.vmem [resolvable:$true] %s38
      %44 = dma.hbm_to_vmem [thread:$0]  %s1, 256, %s39, [#allocation10], 128, 128, 8
    $region9: #{tpu_custom_call.1} parent=1 // pred_fallthru
      _
    // Predicated region
    $region10: #{tpu_custom_call.1} parent=1 // pred_check
      _
    $region11: #{tpu_custom_call.1} parent=1 // pred_check_branch
      %46 = sbr.rel (0) target = $region13
    $region12: #{tpu_custom_call.1} parent=1 // pred_region
      %s48 = ssub.s32 256, 256
      %49 = vsyncadd [#allocation10], %s48
      %s50 = sshll.u32 [#allocation11], 4
      %s51 = int_to_ptr.vmem [resolvable:$true] %s50
      %56 = dma.hbm_to_vmem [thread:$0]  %s2, 256, %s51, [#allocation10], 128, 128, 8
    $region13: #{tpu_custom_call.1} parent=1 // pred_fallthru
      _
    // Predicated region
    $region14: #{tpu_custom_call.1} parent=1 // pred_check
      _
    $region15: #{tpu_custom_call.1} parent=1 // pred_check_branch
      %58 = sbr.rel (0) target = $region17
    $region16: #{tpu_custom_call.1} parent=1 // pred_region
      _
    $region17: #{tpu_custom_call.1} parent=1 // pred_fallthru
      _
    // Predicated region
    $region18: #{tpu_custom_call.1} parent=1 // pred_check
      _
    $region19: #{tpu_custom_call.1} parent=1 // pred_check_branch
      %60 = sbr.rel (0) target = $region21
    $region20: #{tpu_custom_call.1} parent=1 // pred_region
      _
    $region21: #{tpu_custom_call.1} parent=1 // pred_fallthru
      _
    // Predicated region
    $region22: #{tpu_custom_call.1} parent=1 // pred_check
      _
    $region23: #{tpu_custom_call.1} parent=1 // pred_check_branch
      %62 = sbr.rel (0) target = $region25
    $region24: #{tpu_custom_call.1} parent=1 // pred_region
      _
    $region25: #{tpu_custom_call.1} parent=1 // pred_fallthru
      _
    // Predicated region
    $region26: #{tpu_custom_call.1} parent=1 // pred_check
      _
    $region27: #{tpu_custom_call.1} parent=1 // pred_check_branch
      %64 = sbr.rel (0) target = $region29
    $region28: #{tpu_custom_call.1} parent=1 // pred_region
      _
    $region29: #{tpu_custom_call.1} parent=1 // pred_fallthru
      _
    // Predicated region
    $region30: #{tpu_custom_call.1} parent=1 // pred_check
      _
    $region31: #{tpu_custom_call.1} parent=1 // pred_check_branch
      %66 = sbr.rel (0) target = $region33
    $region32: #{tpu_custom_call.1} parent=1 // pred_region
      %s68 = ssub.s32 512, 512
      %69 = vsyncadd [#allocation13], %s68
      %s70 = sshll.u32 [#allocation12], 4
      %s71 = int_to_ptr.vmem [resolvable:$true] %s70
      %76 = dma.hbm_to_vmem [thread:$0]  %s7, 512, %s71, [#allocation13], 64, 64, 4
    $region33: #{tpu_custom_call.1} parent=1 // pred_fallthru
      _
    // Predicated region
    $region34: #{tpu_custom_call.1} parent=1 // pred_check
      _
    $region35: #{tpu_custom_call.1} parent=1 // pred_check_branch
      %78 = sbr.rel (0) target = $region37
    $region36: #{tpu_custom_call.1} parent=1 // pred_region
      _
    $region37: #{tpu_custom_call.1} parent=1 // pred_fallthru
      _
    // Predicated region
    $region38: #{tpu_custom_call.1} parent=1 // pred_check
      _
    $region39: #{tpu_custom_call.1} parent=1 // pred_check_branch
      %80 = sbr.rel (0) target = $region41
    $region40: #{tpu_custom_call.1} parent=1 // pred_region
      _
    $region41: #{tpu_custom_call.1} parent=1 // pred_fallthru
      _
    // Predicated region
    $region42: #{tpu_custom_call.1} parent=1 // pred_check
      _
    $region43: #{tpu_custom_call.1} parent=1 // pred_check_branch
      %82 = sbr.rel (0) target = $region45
    $region44: #{tpu_custom_call.1} parent=1 // pred_region
      %s84 = ssub.s32 1024, 1024
      %85 = vsyncadd [#allocation13], %s84
      %s86 = sshll.u32 [#allocation14], 4
      %s87 = int_to_ptr.vmem [resolvable:$true] %s86
      %92 = dma.hbm_to_vmem [thread:$0]  %s10, 1024, %s87, [#allocation13], 128, 128, 8
    $region45: #{tpu_custom_call.1} parent=1 // pred_fallthru
      _
    // Predicated region
    $region46: #{tpu_custom_call.1} parent=1 // pred_check
      _
    $region47: #{tpu_custom_call.1} parent=1 // pred_check_branch
      %94 = sbr.rel (0) target = $region49
    $region48: #{tpu_custom_call.1} parent=1 // pred_region
      _
    $region49: #{tpu_custom_call.1} parent=1 // pred_fallthru
      _
    // Predicated region
    $region50: #{tpu_custom_call.1} parent=1 // pred_check
      _
    $region51: #{tpu_custom_call.1} parent=1 // pred_check_branch
      %96 = sbr.rel (0) target = $region53
    $region52: #{tpu_custom_call.1} parent=1 // pred_region
      %97 = dma.done [#allocation7], 256
    $region53: #{tpu_custom_call.1} parent=1 // pred_fallthru
      _
    // Predicated region
    $region54: #{tpu_custom_call.1} parent=1 // pred_check
      _
    $region55: #{tpu_custom_call.1} parent=1 // pred_check_branch
      %99 = sbr.rel (0) target = $region57
    $region56: #{tpu_custom_call.1} parent=1 // pred_region
      %100 = dma.done [#allocation10], 256
    $region57: #{tpu_custom_call.1} parent=1 // pred_fallthru
      _
    // Predicated region
    $region58: #{tpu_custom_call.1} parent=1 // pred_check
      _
    $region59: #{tpu_custom_call.1} parent=1 // pred_check_branch
      %102 = sbr.rel (0) target = $region61
    $region60: #{tpu_custom_call.1} parent=1 // pred_region
      %103 = dma.done [#allocation10], 256
    $region61: #{tpu_custom_call.1} parent=1 // pred_fallthru
      _
    // Predicated region
    $region62: #{tpu_custom_call.1} parent=1 // pred_check
      _
    $region63: #{tpu_custom_call.1} parent=1 // pred_check_branch
      %105 = sbr.rel (0) target = $region65
    $region64: #{tpu_custom_call.1} parent=1 // pred_region
      %106 = dma.done [#allocation13], 512
    $region65: #{tpu_custom_call.1} parent=1 // pred_fallthru
      _
    // Predicated region
    $region66: #{tpu_custom_call.1} parent=1 // pred_check
      _
    $region67: #{tpu_custom_call.1} parent=1 // pred_check_branch
      %108 = sbr.rel (0) target = $region69
    $region68: #{tpu_custom_call.1} parent=1 // pred_region
      %109 = dma.done [#allocation13], 1024
    $region69: #{tpu_custom_call.1} parent=1 // pred_fallthru
      _
    %v111 = vld [vmem:[#allocation6] sm:$0xff]
    %v112 = vld [vmem:[#allocation6 + $0x8] sm:$0xff]
    %v113 = vld [vmem:[#allocation9] sm:$0xff]
    %v114 = vld [vmem:[#allocation9 + $0x8] sm:$0xff]
    %v115 = vld [vmem:[#allocation11] sm:$0xff]
    %v116 = vld [vmem:[#allocation11 + $0x8] sm:$0xff]
    %v117 = vld [vmem:[%s4] sm:$0x1]
    %v118 = vld [vmem:[%s5] sm:$0x1]
    %vm119 = vcmask 523264
    %v120 = vsel %vm119, %v111, 0.0
    %121 = vadd.xlane.f32.xlu0 %v120
    %v122 = vpop.xlane.xlu0 %121
    %v123 = vsel %vm119, %v112, 0.0
    %124 = vadd.xlane.f32.xlu0 %v123
    %v125 = vpop.xlane.xlu0 %124
    %v126 = vrcp.pop 64.0
    %v127 = vmul.f32 %v122, %v126
    %v128 = vmul.f32 %v125, %v126
    %v129 = vmul.f32 %v111, %v111
    %v130 = vmul.f32 %v112, %v112
    %v131 = vsel %vm119, %v129, 0.0
    %132 = vadd.xlane.f32.xlu0 %v131
    %v133 = vpop.xlane.xlu0 %132
    %v134 = vsel %vm119, %v130, 0.0
    %135 = vadd.xlane.f32.xlu0 %v134
    %v136 = vpop.xlane.xlu0 %135
    %v137 = vmul.f32 %v133, %v126
    %v138 = vmul.f32 %v136, %v126
    %v139 = vmul.f32 %v127, %v127
    %v140 = vmul.f32 %v128, %v128
    %v141 = vsub.f32 %v137, %v139
    %v142 = vsub.f32 %v138, %v140
    %v143 = vsub.f32 %v111, %v127
    %v144 = vsub.f32 %v112, %v128
    %v145 = vadd.f32 %v141, 1e-05
    %v146 = vadd.f32 %v142, 1e-05
    %v147 = vrsqrt.pop %v145
    %v148 = vrsqrt.pop %v146
    %v149 = vmul.f32 %v143, %v147
    %v150 = vmul.f32 %v144, %v148
    %v152 = vlaneseq
    %v153 = vshrl.u32 %v152, 7
    %v154 = vsub.s32 0, %v153
    %v155 = vrot.slane %v117, %v154
    %v157 = vmul.f32 %v149, %v155
    %v158 = vmul.f32 %v150, %v155
    %v160 = vlaneseq
    %v161 = vshrl.u32 %v160, 7
    %v162 = vsub.s32 0, %v161
    %v163 = vrot.slane %v118, %v162
    %v165 = vadd.f32 %v157, %v163
    %v166 = vadd.f32 %v158, %v163
    %v167 = vpack.c.bf16 %v166, %v165
    %v168 = vld [vmem:[%s6] sm:$0xff]
    %v169 = vld [vmem:[%s6 + $0x8] sm:$0xff]
    %v170 = vld [vmem:[%s6 + $0x10] sm:$0xff]
    %v171 = vld [vmem:[%s6 + $0x18] sm:$0xff]
    %v172 = vld [vmem:[%s6 + $0x20] sm:$0xff]
    %v173 = vld [vmem:[%s6 + $0x28] sm:$0xff]
    %v174 = vld [vmem:[%s6 + $0x30] sm:$0xff]
    %v175 = vld [vmem:[%s6 + $0x38] sm:$0xff]
    %v184 = vunpack.c.l.b16 %v168
    %v185 = vunpack.c.h.b16 %v168
    %v186 = vunpack.c.l.b16 %v169
    %v187 = vunpack.c.h.b16 %v169
    %v188 = vunpack.c.l.b16 %v170
    %v189 = vunpack.c.h.b16 %v170
    %v190 = vunpack.c.l.b16 %v171
    %v191 = vunpack.c.h.b16 %v171
    %v192 = vunpack.c.l.b16 %v172
    %v193 = vunpack.c.h.b16 %v172
    %v194 = vunpack.c.l.b16 %v173
    %v195 = vunpack.c.h.b16 %v173
    %v196 = vunpack.c.l.b16 %v174
    %v197 = vunpack.c.h.b16 %v174
    %v198 = vunpack.c.l.b16 %v175
    %v199 = vunpack.c.h.b16 %v175
    %v200 = vpack.c.b16 %v186, %v184
    %v201 = vpack.c.b16 %v187, %v185
    %v202 = vpack.c.b16 %v190, %v188
    %v203 = vpack.c.b16 %v191, %v189
    %v204 = vpack.c.b16 %v194, %v192
    %v205 = vpack.c.b16 %v195, %v193
    %v206 = vpack.c.b16 %v198, %v196
    %v207 = vpack.c.b16 %v199, %v197
    %v217 = vsel %vm119, %v167, 0
    %219 = vmatprep.subr.bf16.mxu0 0
    %220 = vmatpush1.bf16.msra.mxu0 0
    %221 = vmatprep.subr.bf16.mxu0 0
    %222 = vmatpush1.bf16.msra.mxu0 0
    %223 = vmatprep.subr.bf16.mxu0 0
    %224 = vmatpush1.bf16.msra.mxu0 0
    %225 = vmatprep.subr.bf16.mxu0 0
    %226 = vmatpush1.bf16.msra.mxu0 0
    %227 = vmatprep.subr.bf16.mxu0 %v207
    %228 = vmatpush1.bf16.msra.mxu0 %v206
    %229 = vmatprep.subr.bf16.mxu0 %v205
    %230 = vmatpush1.bf16.msra.mxu0 %v204
    %231 = vmatprep.subr.bf16.mxu0 %v203
    %232 = vmatpush1.bf16.msra.mxu0 %v202
    %233 = vmatprep.subr.bf16.mxu0 %v201
    %234 = vmatpush1.bf16.msra.mxu0 %v200
    %235 = vmatprep.subr.bf16.mxu0 0
    %236 = vmatpush2.bf16.msra.mxu0 0
    %237 = vmatprep.subr.bf16.mxu0 0
    %238 = vmatpush2.bf16.msra.mxu0 0
    %239 = vmatprep.subr.bf16.mxu0 0
    %240 = vmatpush2.bf16.msra.mxu0 0
    %241 = vmatprep.subr.bf16.mxu0 0
    %242 = vmatpush2.bf16.msra.mxu0 0
    %243 = vmatprep.subr.bf16.mxu0 0
    %244 = vmatpush2.bf16.msra.mxu0 0
    %245 = vmatprep.subr.bf16.mxu0 0
    %246 = vmatpush2.bf16.msra.mxu0 0
    %247 = vmatprep.subr.bf16.mxu0 0
    %248 = vmatpush2.bf16.msra.mxu0 0
    %249 = vmatprep.subr.bf16.mxu0 0
    %250 = vmatpush2.bf16.msra.mxu0 0
    %251 = vmatprep.mubr.bf16.mxu0 0
    %252 = vmatmul.mubr.bf16.gmra.mxu0 %v217
    %v253 = vpop.f32.mrf.mxu0
    %v254 = vadd.f32 0.0, %v253
    %v255 = vpop.f32.mrf.mxu0
    %v256 = vadd.f32 0.0, %v255
    %v257 = vpop.f32.mrf.mxu0
    %v258 = vadd.f32 0.0, %v257
    %v259 = vpop.f32.mrf.mxu0
    %v260 = vadd.f32 0.0, %v259
    %261 = vdwg.mxu0
    %v262 = vpack.c.bf16 %v258, %v254
    %v263 = vld [vmem:[%s3] sm:$0xf]
    %v264 = vld [vmem:[%s3 + $0x4] sm:$0xf]
    %v265 = vld [vmem:[%s3 + $0x8] sm:$0xf]
    %v266 = vld [vmem:[%s3 + $0xc] sm:$0xf]
    %v267 = vld [vmem:[%s3 + $0x10] sm:$0xf]
    %v268 = vld [vmem:[%s3 + $0x14] sm:$0xf]
    %v269 = vld [vmem:[%s3 + $0x18] sm:$0xf]
    %v270 = vld [vmem:[%s3 + $0x1c] sm:$0xf]
    %v279 = vunpack.c.l.b16 %v263
    %v280 = vunpack.c.l.b16 %v264
    %v281 = vunpack.c.l.b16 %v265
    %v282 = vunpack.c.l.b16 %v266
    %v283 = vunpack.c.l.b16 %v267
    %v284 = vunpack.c.l.b16 %v268
    %v285 = vunpack.c.l.b16 %v269
    %v286 = vunpack.c.l.b16 %v270
    %v287 = vpack.c.b16 %v280, %v279
    %v288 = vpack.c.b16 %v282, %v281
    %v289 = vpack.c.b16 %v284, %v283
    %v290 = vpack.c.b16 %v286, %v285
    %v296 = vsel %vm119, %v262, 0
    %298 = vmatprep.subr.bf16.mxu0 0
    %299 = vmatpush1.bf16.msra.mxu0 0
    %300 = vmatprep.subr.bf16.mxu0 0
    %301 = vmatpush1.bf16.msra.mxu0 0
    %302 = vmatprep.subr.bf16.mxu0 0
    %303 = vmatpush1.bf16.msra.mxu0 0
    %304 = vmatprep.subr.bf16.mxu0 0
    %305 = vmatpush1.bf16.msra.mxu0 0
    %306 = vmatprep.subr.bf16.mxu0 0
    %307 = vmatpush1.bf16.msra.mxu0 %v290
    %308 = vmatprep.subr.bf16.mxu0 0
    %309 = vmatpush1.bf16.msra.mxu0 %v289
    %310 = vmatprep.subr.bf16.mxu0 0
    %311 = vmatpush1.bf16.msra.mxu0 %v288
    %312 = vmatprep.subr.bf16.mxu0 0
    %313 = vmatpush1.bf16.msra.mxu0 %v287
    %314 = vmatprep.subr.bf16.mxu0 0
    %315 = vmatpush2.bf16.msra.mxu0 0
    %316 = vmatprep.subr.bf16.mxu0 0
    %317 = vmatpush2.bf16.msra.mxu0 0
    %318 = vmatprep.subr.bf16.mxu0 0
    %319 = vmatpush2.bf16.msra.mxu0 0
    %320 = vmatprep.subr.bf16.mxu0 0
    %321 = vmatpush2.bf16.msra.mxu0 0
    %322 = vmatprep.subr.bf16.mxu0 0
    %323 = vmatpush2.bf16.msra.mxu0 0
    %324 = vmatprep.subr.bf16.mxu0 0
    %325 = vmatpush2.bf16.msra.mxu0 0
    %326 = vmatprep.subr.bf16.mxu0 0
    %327 = vmatpush2.bf16.msra.mxu0 0
    %328 = vmatprep.subr.bf16.mxu0 0
    %329 = vmatpush2.bf16.msra.mxu0 0
    %330 = vmatprep.mubr.bf16.mxu0 0
    %331 = vmatmul.mubr.bf16.gmra.mxu0 %v296
    %v332 = vpop.f32.mrf.mxu0
    %v333 = vadd.f32 0.0, %v332
    %v334 = vpop.f32.mrf.mxu0
    %v335 = vpop.f32.mrf.mxu0
    %v336 = vadd.f32 0.0, %v335
    %v337 = vpop.f32.mrf.mxu0
    %338 = vdwg.mxu0
    %340 = vrot.lane.b32.xlu0 %v262, 64
    %v341 = vpop.permute.xlu0 %340
    %v343 = vsel %vm119, %v341, 0
    %345 = vmatprep.subr.bf16.mxu0 0
    %346 = vmatpush1.bf16.msra.mxu0 0
    %347 = vmatprep.subr.bf16.mxu0 0
    %348 = vmatpush1.bf16.msra.mxu0 0
    %349 = vmatprep.subr.bf16.mxu0 0
    %350 = vmatpush1.bf16.msra.mxu0 0
    %351 = vmatprep.subr.bf16.mxu0 0
    %352 = vmatpush1.bf16.msra.mxu0 0
    %353 = vmatprep.subr.bf16.mxu0 0
    %354 = vmatpush1.bf16.msra.mxu0 %v290
    %355 = vmatprep.subr.bf16.mxu0 0
    %356 = vmatpush1.bf16.msra.mxu0 %v289
    %357 = vmatprep.subr.bf16.mxu0 0
    %358 = vmatpush1.bf16.msra.mxu0 %v288
    %359 = vmatprep.subr.bf16.mxu0 0
    %360 = vmatpush1.bf16.msra.mxu0 %v287
    %361 = vmatprep.subr.bf16.mxu0 0
    %362 = vmatpush2.bf16.msra.mxu0 0
    %363 = vmatprep.subr.bf16.mxu0 0
    %364 = vmatpush2.bf16.msra.mxu0 0
    %365 = vmatprep.subr.bf16.mxu0 0
    %366 = vmatpush2.bf16.msra.mxu0 0
    %367 = vmatprep.subr.bf16.mxu0 0
    %368 = vmatpush2.bf16.msra.mxu0 0
    %369 = vmatprep.subr.bf16.mxu0 0
    %370 = vmatpush2.bf16.msra.mxu0 0
    %371 = vmatprep.subr.bf16.mxu0 0
    %372 = vmatpush2.bf16.msra.mxu0 0
    %373 = vmatprep.subr.bf16.mxu0 0
    %374 = vmatpush2.bf16.msra.mxu0 0
    %375 = vmatprep.subr.bf16.mxu0 0
    %376 = vmatpush2.bf16.msra.mxu0 0
    %377 = vmatprep.mubr.bf16.mxu0 0
    %378 = vmatmul.mubr.bf16.gmra.mxu0 %v343
    %v379 = vpop.f32.mrf.mxu0
    %v380 = vadd.f32 0.0, %v379
    %v381 = vpop.f32.mrf.mxu0
    %v382 = vpop.f32.mrf.mxu0
    %v383 = vadd.f32 0.0, %v382
    %v384 = vpop.f32.mrf.mxu0
    %385 = vdwg.mxu0
    %v386 = vmul.f32 %v254, %v113
    %v387 = vmul.f32 %v258, %v114
    %v388 = vmul.f32 %v333, %v115
    %v389 = vmul.f32 %v336, %v116
    %v390 = vadd.f32 %v386, %v388
    %v391 = vadd.f32 %v387, %v389
    %v392 = vmul.f32 %v390, 0.25
    %v393 = vmul.f32 %v391, 0.25
    %v394 = vpack.c.bf16 %v392, %v392
    %v395 = vpack.c.bf16 %v393, %v393
    %vm396 = vcmask 519168
    %397 = vst.msk [vmem:[#allocation2] sm:$0xf] %vm396, %v394
    %398 = vst.msk [vmem:[#allocation2 + $0x4] sm:$0xf] %vm396, %v395
    %401 = vrot.lane.b32.xlu0 %v113, 64
    %v402 = vpop.permute.xlu0 %401
    %403 = vrot.lane.b32.xlu0 %v114, 64
    %v404 = vpop.permute.xlu0 %403
    %v407 = vmul.f32 %v254, %v402
    %v408 = vmul.f32 %v258, %v404
    %v409 = vmul.f32 %v380, %v115
    %v410 = vmul.f32 %v383, %v116
    %413 = vrot.lane.b32.xlu0 %v409, 64
    %v414 = vpop.permute.xlu0 %413
    %415 = vrot.lane.b32.xlu0 %v410, 64
    %v416 = vpop.permute.xlu0 %415
    %v419 = vadd.f32 %v407, %v414
    %v420 = vadd.f32 %v408, %v416
    %v421 = vpack.c.bf16 %v419, %v419
    %v422 = vpack.c.bf16 %v420, %v420
    %v425 = vunpack.c.l.b16 %v421
    %v426 = vunpack.c.l.b16 %v422
    %v427 = vpack.c.b16 %v425, %v425
    %v428 = vpack.c.b16 %v426, %v426
    %429 = vrot.lane.b32.xlu0 %v427, 64
    %v430 = vpop.permute.xlu0 %429
    %431 = vrot.lane.b32.xlu0 %v428, 64
    %v432 = vpop.permute.xlu0 %431
    %435 = vst.msk [vmem:[#allocation3] sm:$0xf] %vm396, %v430
    %436 = vst.msk [vmem:[#allocation3 + $0x4] sm:$0xf] %vm396, %v432
    %v437 = vpack.c.bf16 %v256, %v256
    %v438 = vpack.c.bf16 %v260, %v260
    %439 = vst.msk [vmem:[#allocation4] sm:$0xf] %vm396, %v437
    %440 = vst.msk [vmem:[#allocation4 + $0x4] sm:$0xf] %vm396, %v438
    %v441 = vld [vmem:[#allocation2] sm:$0xf]
    %v442 = vld [vmem:[#allocation2 + $0x4] sm:$0xf]
    %v443 = vld [vmem:[#allocation3] sm:$0xf]
    %v444 = vld [vmem:[#allocation3 + $0x4] sm:$0xf]
    %v445 = vld [vmem:[#allocation4] sm:$0xf]
    %v446 = vld [vmem:[#allocation4 + $0x4] sm:$0xf]
    %vm447 = vcmask 130048
    %v449 = vsel %vm447, %v441, 0
    %v452 = vsel %vm447, %v443, 0
    %454 = vmatprep.subr.bf16.mxu0 0
    %455 = vmatpush1.bf16.xpose.msra.mxu0 0
    %456 = vmatprep.subr.bf16.mxu0 0
    %457 = vmatpush1.bf16.xpose.msra.mxu0 0
    %458 = vmatprep.subr.bf16.mxu0 0
    %459 = vmatpush1.bf16.xpose.msra.mxu0 0
    %460 = vmatprep.subr.bf16.mxu0 0
    %461 = vmatpush1.bf16.xpose.msra.mxu0 0
    %462 = vmatprep.subr.bf16.mxu0 0
    %463 = vmatpush1.bf16.xpose.msra.mxu0 0
    %464 = vmatprep.subr.bf16.mxu0 0
    %465 = vmatpush1.bf16.xpose.msra.mxu0 0
    %466 = vmatprep.subr.bf16.mxu0 0
    %467 = vmatpush1.bf16.xpose.msra.mxu0 0
    %468 = vmatprep.subr.bf16.mxu0 0
    %469 = vmatpush1.bf16.xpose.msra.mxu0 %v452
    %470 = vmatprep.subr.bf16.mxu0 0
    %471 = vmatpush2.bf16.xpose.msra.mxu0 0
    %472 = vmatprep.subr.bf16.mxu0 0
    %473 = vmatpush2.bf16.xpose.msra.mxu0 0
    %474 = vmatprep.subr.bf16.mxu0 0
    %475 = vmatpush2.bf16.xpose.msra.mxu0 0
    %476 = vmatprep.subr.bf16.mxu0 0
    %477 = vmatpush2.bf16.xpose.msra.mxu0 0
    %478 = vmatprep.subr.bf16.mxu0 0
    %479 = vmatpush2.bf16.xpose.msra.mxu0 0
    %480 = vmatprep.subr.bf16.mxu0 0
    %481 = vmatpush2.bf16.xpose.msra.mxu0 0
    %482 = vmatprep.subr.bf16.mxu0 0
    %483 = vmatpush2.bf16.xpose.msra.mxu0 0
    %484 = vmatprep.subr.bf16.mxu0 0
    %485 = vmatpush2.bf16.xpose.msra.mxu0 0
    %486 = vmatprep.mubr.bf16.mxu0 0
    %487 = vmatmul.mubr.bf16.gmra.mxu0 %v449
    %v488 = vpop.f32.mrf.mxu0
    %v489 = vadd.f32 0.0, %v488
    %v490 = vpop.f32.mrf.mxu0
    %v491 = vpop.f32.mrf.mxu0
    %v492 = vpop.f32.mrf.mxu0
    %493 = vdwg.mxu0
    %v495 = vsel %vm447, %v442, 0
    %v498 = vsel %vm447, %v444, 0
    %500 = vmatprep.subr.bf16.mxu0 0
    %501 = vmatpush1.bf16.xpose.msra.mxu0 0
    %502 = vmatprep.subr.bf16.mxu0 0
    %503 = vmatpush1.bf16.xpose.msra.mxu0 0
    %504 = vmatprep.subr.bf16.mxu0 0
    %505 = vmatpush1.bf16.xpose.msra.mxu0 0
    %506 = vmatprep.subr.bf16.mxu0 0
    %507 = vmatpush1.bf16.xpose.msra.mxu0 0
    %508 = vmatprep.subr.bf16.mxu0 0
    %509 = vmatpush1.bf16.xpose.msra.mxu0 0
    %510 = vmatprep.subr.bf16.mxu0 0
    %511 = vmatpush1.bf16.xpose.msra.mxu0 0
    %512 = vmatprep.subr.bf16.mxu0 0
    %513 = vmatpush1.bf16.xpose.msra.mxu0 0
    %514 = vmatprep.subr.bf16.mxu0 0
    %515 = vmatpush1.bf16.xpose.msra.mxu0 %v498
    %516 = vmatprep.subr.bf16.mxu0 0
    %517 = vmatpush2.bf16.xpose.msra.mxu0 0
    %518 = vmatprep.subr.bf16.mxu0 0
    %519 = vmatpush2.bf16.xpose.msra.mxu0 0
    %520 = vmatprep.subr.bf16.mxu0 0
    %521 = vmatpush2.bf16.xpose.msra.mxu0 0
    %522 = vmatprep.subr.bf16.mxu0 0
    %523 = vmatpush2.bf16.xpose.msra.mxu0 0
    %524 = vmatprep.subr.bf16.mxu0 0
    %525 = vmatpush2.bf16.xpose.msra.mxu0 0
    %526 = vmatprep.subr.bf16.mxu0 0
    %527 = vmatpush2.bf16.xpose.msra.mxu0 0
    %528 = vmatprep.subr.bf16.mxu0 0
    %529 = vmatpush2.bf16.xpose.msra.mxu0 0
    %530 = vmatprep.subr.bf16.mxu0 0
    %531 = vmatpush2.bf16.xpose.msra.mxu0 0
    %532 = vmatprep.mubr.bf16.mxu0 0
    %533 = vmatmul.mubr.bf16.gmra.mxu0 %v495
    %v534 = vpop.f32.mrf.mxu0
    %v535 = vadd.f32 0.0, %v534
    %v536 = vpop.f32.mrf.mxu0
    %v537 = vpop.f32.mrf.mxu0
    %v538 = vpop.f32.mrf.mxu0
    %539 = vdwg.mxu0
    %vm540 = vcmask 64512
    %v541 = vsel %vm540, %v489, -inf
    %542 = vmax.xlane.f32.xlu0 %v541
    %v543 = vpop.xlane.xlu0 %542
    %v544 = vsel %vm540, %v535, -inf
    %545 = vmax.xlane.f32.xlu0 %v544
    %v546 = vpop.xlane.xlu0 %545
    %v547 = vsub.f32 -inf, %v543
    %v548 = vsub.f32 -inf, %v546
    %v549 = vmul.f32 %v547, 1.442695
    %v550 = vpow.pop %v549
    %v551 = vmul.f32 %v548, 1.442695
    %v552 = vpow.pop %v551
    %v553 = vsub.f32 %v489, %v543
    %v554 = vsub.f32 %v535, %v546
    %v555 = vmul.f32 %v553, 1.442695
    %v556 = vpow.pop %v555
    %v557 = vmul.f32 %v554, 1.442695
    %v558 = vpow.pop %v557
    %v559 = vmul.f32 %v550, 0.0
    %v560 = vmul.f32 %v552, 0.0
    %v561 = vsel %vm540, %v556, 0.0
    %562 = vadd.xlane.f32.xlu0 %v561
    %v563 = vpop.xlane.xlu0 %562
    %v564 = vsel %vm540, %v558, 0.0
    %565 = vadd.xlane.f32.xlu0 %v564
    %v566 = vpop.xlane.xlu0 %565
    %v567 = vadd.f32 %v559, %v563
    %v568 = vadd.f32 %v560, %v566
    %v569 = vpack.c.bf16 %v556, %v556
    %v570 = vpack.c.bf16 %v558, %v558
    %v572 = vsel %vm540, %v569, 0
    %vm574 = vcmask 1043456
    %v576 = vsel %vm574, %v445, 0
    %578 = vmatprep.subr.bf16.mxu0 0
    %579 = vmatpush1.bf16.msra.mxu0 0
    %580 = vmatprep.subr.bf16.mxu0 0
    %581 = vmatpush1.bf16.msra.mxu0 0
    %582 = vmatprep.subr.bf16.mxu0 0
    %583 = vmatpush1.bf16.msra.mxu0 0
    %584 = vmatprep.subr.bf16.mxu0 0
    %585 = vmatpush1.bf16.msra.mxu0 0
    %586 = vmatprep.subr.bf16.mxu0 0
    %587 = vmatpush1.bf16.msra.mxu0 0
    %588 = vmatprep.subr.bf16.mxu0 0
    %589 = vmatpush1.bf16.msra.mxu0 0
    %590 = vmatprep.subr.bf16.mxu0 0
    %591 = vmatpush1.bf16.msra.mxu0 0
    %592 = vmatprep.subr.bf16.mxu0 0
    %593 = vmatpush1.bf16.msra.mxu0 %v576
    %594 = vmatprep.subr.bf16.mxu0 0
    %595 = vmatpush2.bf16.msra.mxu0 0
    %596 = vmatprep.subr.bf16.mxu0 0
    %597 = vmatpush2.bf16.msra.mxu0 0
    %598 = vmatprep.subr.bf16.mxu0 0
    %599 = vmatpush2.bf16.msra.mxu0 0
    %600 = vmatprep.subr.bf16.mxu0 0
    %601 = vmatpush2.bf16.msra.mxu0 0
    %602 = vmatprep.subr.bf16.mxu0 0
    %603 = vmatpush2.bf16.msra.mxu0 0
    %604 = vmatprep.subr.bf16.mxu0 0
    %605 = vmatpush2.bf16.msra.mxu0 0
    %606 = vmatprep.subr.bf16.mxu0 0
    %607 = vmatpush2.bf16.msra.mxu0 0
    %608 = vmatprep.subr.bf16.mxu0 0
    %609 = vmatpush2.bf16.msra.mxu0 0
    %610 = vmatprep.mubr.bf16.mxu0 0
    %611 = vmatmul.mubr.bf16.gmra.mxu0 %v572
    %v612 = vpop.f32.mrf.mxu0
    %v613 = vadd.f32 0.0, %v612
    %v614 = vpop.f32.mrf.mxu0
    %v615 = vpop.f32.mrf.mxu0
    %v616 = vpop.f32.mrf.mxu0
    %617 = vdwg.mxu0
    %v619 = vsel %vm540, %v570, 0
    %v622 = vsel %vm574, %v446, 0
    %624 = vmatprep.subr.bf16.mxu0 0
    %625 = vmatpush1.bf16.msra.mxu0 0
    %626 = vmatprep.subr.bf16.mxu0 0
    %627 = vmatpush1.bf16.msra.mxu0 0
    %628 = vmatprep.subr.bf16.mxu0 0
    %629 = vmatpush1.bf16.msra.mxu0 0
    %630 = vmatprep.subr.bf16.mxu0 0
    %631 = vmatpush1.bf16.msra.mxu0 0
    %632 = vmatprep.subr.bf16.mxu0 0
    %633 = vmatpush1.bf16.msra.mxu0 0
    %634 = vmatprep.subr.bf16.mxu0 0
    %635 = vmatpush1.bf16.msra.mxu0 0
    %636 = vmatprep.subr.bf16.mxu0 0
    %637 = vmatpush1.bf16.msra.mxu0 0
    %638 = vmatprep.subr.bf16.mxu0 0
    %639 = vmatpush1.bf16.msra.mxu0 %v622
    %640 = vmatprep.subr.bf16.mxu0 0
    %641 = vmatpush2.bf16.msra.mxu0 0
    %642 = vmatprep.subr.bf16.mxu0 0
    %643 = vmatpush2.bf16.msra.mxu0 0
    %644 = vmatprep.subr.bf16.mxu0 0
    %645 = vmatpush2.bf16.msra.mxu0 0
    %646 = vmatprep.subr.bf16.mxu0 0
    %647 = vmatpush2.bf16.msra.mxu0 0
    %648 = vmatprep.subr.bf16.mxu0 0
    %649 = vmatpush2.bf16.msra.mxu0 0
    %650 = vmatprep.subr.bf16.mxu0 0
    %651 = vmatpush2.bf16.msra.mxu0 0
    %652 = vmatprep.subr.bf16.mxu0 0
    %653 = vmatpush2.bf16.msra.mxu0 0
    %654 = vmatprep.subr.bf16.mxu0 0
    %655 = vmatpush2.bf16.msra.mxu0 0
    %656 = vmatprep.mubr.bf16.mxu0 0
    %657 = vmatmul.mubr.bf16.gmra.mxu0 %v619
    %v658 = vpop.f32.mrf.mxu0
    %v659 = vadd.f32 0.0, %v658
    %v660 = vpop.f32.mrf.mxu0
    %v661 = vpop.f32.mrf.mxu0
    %v662 = vpop.f32.mrf.mxu0
    %663 = vdwg.mxu0
    %v664 = vadd.f32 %v559, %v613
    %v665 = vadd.f32 %v560, %v659
    %v666 = vrcp.pop %v567
    %v667 = vrcp.pop %v568
    %v668 = vmul.f32 %v664, %v666
    %v669 = vmul.f32 %v665, %v667
    %670 = vst.msk [vmem:[#allocation5] sm:$0xff] %vm447, %v668
    %671 = vst.msk [vmem:[#allocation5 + $0x8] sm:$0xff] %vm447, %v669
    %v672 = vld [vmem:[#allocation2] sm:$0xf]
    %v673 = vld [vmem:[#allocation2 + $0x4] sm:$0xf]
    %v674 = vld [vmem:[#allocation3] sm:$0xf]
    %v675 = vld [vmem:[#allocation3 + $0x4] sm:$0xf]
    %v676 = vld [vmem:[#allocation4] sm:$0xf]
    %v677 = vld [vmem:[#allocation4 + $0x4] sm:$0xf]
    %v679 = vunpack.c.l.b16 %v672
    %v680 = vpack.c.b16 %v679, %v679
    %681 = vrot.lane.b32.xlu0 %v680, 112
    %v682 = vpop.permute.xlu0 %681
    %v684 = vunpack.c.l.b16 %v674
    %v685 = vpack.c.b16 %v684, %v684
    %686 = vrot.lane.b32.xlu0 %v685, 112
    %v687 = vpop.permute.xlu0 %686
    %v689 = vsel %vm447, %v682, 0
    %v692 = vsel %vm447, %v687, 0
    %694 = vmatprep.subr.bf16.mxu0 0
    %695 = vmatpush1.bf16.xpose.msra.mxu0 0
    %696 = vmatprep.subr.bf16.mxu0 0
    %697 = vmatpush1.bf16.xpose.msra.mxu0 0
    %698 = vmatprep.subr.bf16.mxu0 0
    %699 = vmatpush1.bf16.xpose.msra.mxu0 0
    %700 = vmatprep.subr.bf16.mxu0 0
    %701 = vmatpush1.bf16.xpose.msra.mxu0 0
    %702 = vmatprep.subr.bf16.mxu0 0
    %703 = vmatpush1.bf16.xpose.msra.mxu0 0
    %704 = vmatprep.subr.bf16.mxu0 0
    %705 = vmatpush1.bf16.xpose.msra.mxu0 0
    %706 = vmatprep.subr.bf16.mxu0 0
    %707 = vmatpush1.bf16.xpose.msra.mxu0 0
    %708 = vmatprep.subr.bf16.mxu0 0
    %709 = vmatpush1.bf16.xpose.msra.mxu0 %v692
    %710 = vmatprep.subr.bf16.mxu0 0
    %711 = vmatpush2.bf16.xpose.msra.mxu0 0
    %712 = vmatprep.subr.bf16.mxu0 0
    %713 = vmatpush2.bf16.xpose.msra.mxu0 0
    %714 = vmatprep.subr.bf16.mxu0 0
    %715 = vmatpush2.bf16.xpose.msra.mxu0 0
    %716 = vmatprep.subr.bf16.mxu0 0
    %717 = vmatpush2.bf16.xpose.msra.mxu0 0
    %718 = vmatprep.subr.bf16.mxu0 0
    %719 = vmatpush2.bf16.xpose.msra.mxu0 0
    %720 = vmatprep.subr.bf16.mxu0 0
    %721 = vmatpush2.bf16.xpose.msra.mxu0 0
    %722 = vmatprep.subr.bf16.mxu0 0
    %723 = vmatpush2.bf16.xpose.msra.mxu0 0
    %724 = vmatprep.subr.bf16.mxu0 0
    %725 = vmatpush2.bf16.xpose.msra.mxu0 0
    %726 = vmatprep.mubr.bf16.mxu0 0
    %727 = vmatmul.mubr.bf16.gmra.mxu0 %v689
    %v728 = vpop.f32.mrf.mxu0
    %v729 = vadd.f32 0.0, %v728
    %v730 = vpop.f32.mrf.mxu0
    %v731 = vpop.f32.mrf.mxu0
    %v732 = vpop.f32.mrf.mxu0
    %733 = vdwg.mxu0
    %v735 = vunpack.c.l.b16 %v673
    %v736 = vpack.c.b16 %v735, %v735
    %737 = vrot.lane.b32.xlu0 %v736, 112
    %v738 = vpop.permute.xlu0 %737
    %v740 = vunpack.c.l.b16 %v675
    %v741 = vpack.c.b16 %v740, %v740
    %742 = vrot.lane.b32.xlu0 %v741, 112
    %v743 = vpop.permute.xlu0 %742
    %v745 = vsel %vm447, %v738, 0
    %v748 = vsel %vm447, %v743, 0
    %750 = vmatprep.subr.bf16.mxu0 0
    %751 = vmatpush1.bf16.xpose.msra.mxu0 0
    %752 = vmatprep.subr.bf16.mxu0 0
    %753 = vmatpush1.bf16.xpose.msra.mxu0 0
    %754 = vmatprep.subr.bf16.mxu0 0
    %755 = vmatpush1.bf16.xpose.msra.mxu0 0
    %756 = vmatprep.subr.bf16.mxu0 0
    %757 = vmatpush1.bf16.xpose.msra.mxu0 0
    %758 = vmatprep.subr.bf16.mxu0 0
    %759 = vmatpush1.bf16.xpose.msra.mxu0 0
    %760 = vmatprep.subr.bf16.mxu0 0
    %761 = vmatpush1.bf16.xpose.msra.mxu0 0
    %762 = vmatprep.subr.bf16.mxu0 0
    %763 = vmatpush1.bf16.xpose.msra.mxu0 0
    %764 = vmatprep.subr.bf16.mxu0 0
    %765 = vmatpush1.bf16.xpose.msra.mxu0 %v748
    %766 = vmatprep.subr.bf16.mxu0 0
    %767 = vmatpush2.bf16.xpose.msra.mxu0 0
    %768 = vmatprep.subr.bf16.mxu0 0
    %769 = vmatpush2.bf16.xpose.msra.mxu0 0
    %770 = vmatprep.subr.bf16.mxu0 0
    %771 = vmatpush2.bf16.xpose.msra.mxu0 0
    %772 = vmatprep.subr.bf16.mxu0 0
    %773 = vmatpush2.bf16.xpose.msra.mxu0 0
    %774 = vmatprep.subr.bf16.mxu0 0
    %775 = vmatpush2.bf16.xpose.msra.mxu0 0
    %776 = vmatprep.subr.bf16.mxu0 0
    %777 = vmatpush2.bf16.xpose.msra.mxu0 0
    %778 = vmatprep.subr.bf16.mxu0 0
    %779 = vmatpush2.bf16.xpose.msra.mxu0 0
    %780 = vmatprep.subr.bf16.mxu0 0
    %781 = vmatpush2.bf16.xpose.msra.mxu0 0
    %782 = vmatprep.mubr.bf16.mxu0 0
    %783 = vmatmul.mubr.bf16.gmra.mxu0 %v745
    %v784 = vpop.f32.mrf.mxu0
    %v785 = vadd.f32 0.0, %v784
    %v786 = vpop.f32.mrf.mxu0
    %v787 = vpop.f32.mrf.mxu0
    %v788 = vpop.f32.mrf.mxu0
    %789 = vdwg.mxu0
    %v790 = vsel %vm540, %v729, -inf
    %791 = vmax.xlane.f32.xlu0 %v790
    %v792 = vpop.xlane.xlu0 %791
    %v793 = vsel %vm540, %v785, -inf
    %794 = vmax.xlane.f32.xlu0 %v793
    %v795 = vpop.xlane.xlu0 %794
    %v796 = vsub.f32 -inf, %v792
    %v797 = vsub.f32 -inf, %v795
    %v798 = vmul.f32 %v796, 1.442695
    %v799 = vpow.pop %v798
    %v800 = vmul.f32 %v797, 1.442695
    %v801 = vpow.pop %v800
    %v802 = vsub.f32 %v729, %v792
    %v803 = vsub.f32 %v785, %v795
    %v804 = vmul.f32 %v802, 1.442695
    %v805 = vpow.pop %v804
    %v806 = vmul.f32 %v803, 1.442695
    %v807 = vpow.pop %v806
    %v808 = vmul.f32 %v799, 0.0
    %v809 = vmul.f32 %v801, 0.0
    %v810 = vsel %vm540, %v805, 0.0
    %811 = vadd.xlane.f32.xlu0 %v810
    %v812 = vpop.xlane.xlu0 %811
    %v813 = vsel %vm540, %v807, 0.0
    %814 = vadd.xlane.f32.xlu0 %v813
    %v815 = vpop.xlane.xlu0 %814
    %v816 = vadd.f32 %v808, %v812
    %v817 = vadd.f32 %v809, %v815
    %v818 = vpack.c.bf16 %v805, %v805
    %v819 = vpack.c.bf16 %v807, %v807
    %v821 = vunpack.c.l.b16 %v676
    %v822 = vpack.c.b16 %v821, %v821
    %823 = vrot.lane.b32.xlu0 %v822, 112
    %v824 = vpop.permute.xlu0 %823
    %v826 = vsel %vm540, %v818, 0
    %v829 = vsel %vm574, %v824, 0
    %831 = vmatprep.subr.bf16.mxu0 0
    %832 = vmatpush1.bf16.msra.mxu0 0
    %833 = vmatprep.subr.bf16.mxu0 0
    %834 = vmatpush1.bf16.msra.mxu0 0
    %835 = vmatprep.subr.bf16.mxu0 0
    %836 = vmatpush1.bf16.msra.mxu0 0
    %837 = vmatprep.subr.bf16.mxu0 0
    %838 = vmatpush1.bf16.msra.mxu0 0
    %839 = vmatprep.subr.bf16.mxu0 0
    %840 = vmatpush1.bf16.msra.mxu0 0
    %841 = vmatprep.subr.bf16.mxu0 0
    %842 = vmatpush1.bf16.msra.mxu0 0
    %843 = vmatprep.subr.bf16.mxu0 0
    %844 = vmatpush1.bf16.msra.mxu0 0
    %845 = vmatprep.subr.bf16.mxu0 0
    %846 = vmatpush1.bf16.msra.mxu0 %v829
    %847 = vmatprep.subr.bf16.mxu0 0
    %848 = vmatpush2.bf16.msra.mxu0 0
    %849 = vmatprep.subr.bf16.mxu0 0
    %850 = vmatpush2.bf16.msra.mxu0 0
    %851 = vmatprep.subr.bf16.mxu0 0
    %852 = vmatpush2.bf16.msra.mxu0 0
    %853 = vmatprep.subr.bf16.mxu0 0
    %854 = vmatpush2.bf16.msra.mxu0 0
    %855 = vmatprep.subr.bf16.mxu0 0
    %856 = vmatpush2.bf16.msra.mxu0 0
    %857 = vmatprep.subr.bf16.mxu0 0
    %858 = vmatpush2.bf16.msra.mxu0 0
    %859 = vmatprep.subr.bf16.mxu0 0
    %860 = vmatpush2.bf16.msra.mxu0 0
    %861 = vmatprep.subr.bf16.mxu0 0
    %862 = vmatpush2.bf16.msra.mxu0 0
    %863 = vmatprep.mubr.bf16.mxu0 0
    %864 = vmatmul.mubr.bf16.gmra.mxu0 %v826
    %v865 = vpop.f32.mrf.mxu0
    %v866 = vadd.f32 0.0, %v865
    %v867 = vpop.f32.mrf.mxu0
    %v868 = vpop.f32.mrf.mxu0
    %v869 = vpop.f32.mrf.mxu0
    %870 = vdwg.mxu0
    %v872 = vunpack.c.l.b16 %v677
    %v873 = vpack.c.b16 %v872, %v872
    %874 = vrot.lane.b32.xlu0 %v873, 112
    %v875 = vpop.permute.xlu0 %874
    %v877 = vsel %vm540, %v819, 0
    %v880 = vsel %vm574, %v875, 0
    %882 = vmatprep.subr.bf16.mxu0 0
    %883 = vmatpush1.bf16.msra.mxu0 0
    %884 = vmatprep.subr.bf16.mxu0 0
    %885 = vmatpush1.bf16.msra.mxu0 0
    %886 = vmatprep.subr.bf16.mxu0 0
    %887 = vmatpush1.bf16.msra.mxu0 0
    %888 = vmatprep.subr.bf16.mxu0 0
    %889 = vmatpush1.bf16.msra.mxu0 0
    %890 = vmatprep.subr.bf16.mxu0 0
    %891 = vmatpush1.bf16.msra.mxu0 0
    %892 = vmatprep.subr.bf16.mxu0 0
    %893 = vmatpush1.bf16.msra.mxu0 0
    %894 = vmatprep.subr.bf16.mxu0 0
    %895 = vmatpush1.bf16.msra.mxu0 0
    %896 = vmatprep.subr.bf16.mxu0 0
    %897 = vmatpush1.bf16.msra.mxu0 %v880
    %898 = vmatprep.subr.bf16.mxu0 0
    %899 = vmatpush2.bf16.msra.mxu0 0
    %900 = vmatprep.subr.bf16.mxu0 0
    %901 = vmatpush2.bf16.msra.mxu0 0
    %902 = vmatprep.subr.bf16.mxu0 0
    %903 = vmatpush2.bf16.msra.mxu0 0
    %904 = vmatprep.subr.bf16.mxu0 0
    %905 = vmatpush2.bf16.msra.mxu0 0
    %906 = vmatprep.subr.bf16.mxu0 0
    %907 = vmatpush2.bf16.msra.mxu0 0
    %908 = vmatprep.subr.bf16.mxu0 0
    %909 = vmatpush2.bf16.msra.mxu0 0
    %910 = vmatprep.subr.bf16.mxu0 0
    %911 = vmatpush2.bf16.msra.mxu0 0
    %912 = vmatprep.subr.bf16.mxu0 0
    %913 = vmatpush2.bf16.msra.mxu0 0
    %914 = vmatprep.mubr.bf16.mxu0 0
    %915 = vmatmul.mubr.bf16.gmra.mxu0 %v877
    %v916 = vpop.f32.mrf.mxu0
    %v917 = vadd.f32 0.0, %v916
    %v918 = vpop.f32.mrf.mxu0
    %v919 = vpop.f32.mrf.mxu0
    %v920 = vpop.f32.mrf.mxu0
    %921 = vdwg.mxu0
    %v922 = vadd.f32 %v808, %v866
    %v923 = vadd.f32 %v809, %v917
    %v924 = vrcp.pop %v816
    %v925 = vrcp.pop %v817
    %v926 = vmul.f32 %v922, %v924
    %v927 = vmul.f32 %v923, %v925
    %930 = vrot.lane.b32.xlu0 %v926, 16
    %v931 = vpop.permute.xlu0 %930
    %932 = vrot.lane.b32.xlu0 %v927, 16
    %v933 = vpop.permute.xlu0 %932
    %vm936 = vcmask 261248
    %937 = vst.msk [vmem:[#allocation5] sm:$0xff] %vm936, %v931
    %938 = vst.msk [vmem:[#allocation5 + $0x8] sm:$0xff] %vm936, %v933
    %v939 = vld [vmem:[#allocation2] sm:$0xf]
    %v940 = vld [vmem:[#allocation2 + $0x4] sm:$0xf]
    %v941 = vld [vmem:[#allocation3] sm:$0xf]
    %v942 = vld [vmem:[#allocation3 + $0x4] sm:$0xf]
    %v943 = vld [vmem:[#allocation4] sm:$0xf]
    %v944 = vld [vmem:[#allocation4 + $0x4] sm:$0xf]
    %v946 = vunpack.c.l.b16 %v939
    %v947 = vpack.c.b16 %v946, %v946
    %948 = vrot.lane.b32.xlu0 %v947, 96
    %v949 = vpop.permute.xlu0 %948
    %v951 = vunpack.c.l.b16 %v941
    %v952 = vpack.c.b16 %v951, %v951
    %953 = vrot.lane.b32.xlu0 %v952, 96
    %v954 = vpop.permute.xlu0 %953
    %v956 = vsel %vm447, %v949, 0
    %v959 = vsel %vm447, %v954, 0
    %961 = vmatprep.subr.bf16.mxu0 0
    %962 = vmatpush1.bf16.xpose.msra.mxu0 0
    %963 = vmatprep.subr.bf16.mxu0 0
    %964 = vmatpush1.bf16.xpose.msra.mxu0 0
    %965 = vmatprep.subr.bf16.mxu0 0
    %966 = vmatpush1.bf16.xpose.msra.mxu0 0
    %967 = vmatprep.subr.bf16.mxu0 0
    %968 = vmatpush1.bf16.xpose.msra.mxu0 0
    %969 = vmatprep.subr.bf16.mxu0 0
    %970 = vmatpush1.bf16.xpose.msra.mxu0 0
    %971 = vmatprep.subr.bf16.mxu0 0
    %972 = vmatpush1.bf16.xpose.msra.mxu0 0
    %973 = vmatprep.subr.bf16.mxu0 0
    %974 = vmatpush1.bf16.xpose.msra.mxu0 0
    %975 = vmatprep.subr.bf16.mxu0 0
    %976 = vmatpush1.bf16.xpose.msra.mxu0 %v959
    %977 = vmatprep.subr.bf16.mxu0 0
    %978 = vmatpush2.bf16.xpose.msra.mxu0 0
    %979 = vmatprep.subr.bf16.mxu0 0
    %980 = vmatpush2.bf16.xpose.msra.mxu0 0
    %981 = vmatprep.subr.bf16.mxu0 0
    %982 = vmatpush2.bf16.xpose.msra.mxu0 0
    %983 = vmatprep.subr.bf16.mxu0 0
    %984 = vmatpush2.bf16.xpose.msra.mxu0 0
    %985 = vmatprep.subr.bf16.mxu0 0
    %986 = vmatpush2.bf16.xpose.msra.mxu0 0
    %987 = vmatprep.subr.bf16.mxu0 0
    %988 = vmatpush2.bf16.xpose.msra.mxu0 0
    %989 = vmatprep.subr.bf16.mxu0 0
    %990 = vmatpush2.bf16.xpose.msra.mxu0 0
    %991 = vmatprep.subr.bf16.mxu0 0
    %992 = vmatpush2.bf16.xpose.msra.mxu0 0
    %993 = vmatprep.mubr.bf16.mxu0 0
    %994 = vmatmul.mubr.bf16.gmra.mxu0 %v956
    %v995 = vpop.f32.mrf.mxu0
    %v996 = vadd.f32 0.0, %v995
    %v997 = vpop.f32.mrf.mxu0
    %v998 = vpop.f32.mrf.mxu0
    %v999 = vpop.f32.mrf.mxu0
    %1000 = vdwg.mxu0
    %v1002 = vunpack.c.l.b16 %v940
    %v1003 = vpack.c.b16 %v1002, %v1002
    %1004 = vrot.lane.b32.xlu0 %v1003, 96
    %v1005 = vpop.permute.xlu0 %1004
    %v1007 = vunpack.c.l.b16 %v942
    %v1008 = vpack.c.b16 %v1007, %v1007
    %1009 = vrot.lane.b32.xlu0 %v1008, 96
    %v1010 = vpop.permute.xlu0 %1009
    %v1012 = vsel %vm447, %v1005, 0
    %v1015 = vsel %vm447, %v1010, 0
    %1017 = vmatprep.subr.bf16.mxu0 0
    %1018 = vmatpush1.bf16.xpose.msra.mxu0 0
    %1019 = vmatprep.subr.bf16.mxu0 0
    %1020 = vmatpush1.bf16.xpose.msra.mxu0 0
    %1021 = vmatprep.subr.bf16.mxu0 0
    %1022 = vmatpush1.bf16.xpose.msra.mxu0 0
    %1023 = vmatprep.subr.bf16.mxu0 0
    %1024 = vmatpush1.bf16.xpose.msra.mxu0 0
    %1025 = vmatprep.subr.bf16.mxu0 0
    %1026 = vmatpush1.bf16.xpose.msra.mxu0 0
    %1027 = vmatprep.subr.bf16.mxu0 0
    %1028 = vmatpush1.bf16.xpose.msra.mxu0 0
    %1029 = vmatprep.subr.bf16.mxu0 0
    %1030 = vmatpush1.bf16.xpose.msra.mxu0 0
    %1031 = vmatprep.subr.bf16.mxu0 0
    %1032 = vmatpush1.bf16.xpose.msra.mxu0 %v1015
    %1033 = vmatprep.subr.bf16.mxu0 0
    %1034 = vmatpush2.bf16.xpose.msra.mxu0 0
    %1035 = vmatprep.subr.bf16.mxu0 0
    %1036 = vmatpush2.bf16.xpose.msra.mxu0 0
    %1037 = vmatprep.subr.bf16.mxu0 0
    %1038 = vmatpush2.bf16.xpose.msra.mxu0 0
    %1039 = vmatprep.subr.bf16.mxu0 0
    %1040 = vmatpush2.bf16.xpose.msra.mxu0 0
    %1041 = vmatprep.subr.bf16.mxu0 0
    %1042 = vmatpush2.bf16.xpose.msra.mxu0 0
    %1043 = vmatprep.subr.bf16.mxu0 0
    %1044 = vmatpush2.bf16.xpose.msra.mxu0 0
    %1045 = vmatprep.subr.bf16.mxu0 0
    %1046 = vmatpush2.bf16.xpose.msra.mxu0 0
    %1047 = vmatprep.subr.bf16.mxu0 0
    %1048 = vmatpush2.bf16.xpose.msra.mxu0 0
    %1049 = vmatprep.mubr.bf16.mxu0 0
    %1050 = vmatmul.mubr.bf16.gmra.mxu0 %v1012
    %v1051 = vpop.f32.mrf.mxu0
    %v1052 = vadd.f32 0.0, %v1051
    %v1053 = vpop.f32.mrf.mxu0
    %v1054 = vpop.f32.mrf.mxu0
    %v1055 = vpop.f32.mrf.mxu0
    %1056 = vdwg.mxu0
    %v1057 = vsel %vm540, %v996, -inf
    %1058 = vmax.xlane.f32.xlu0 %v1057
    %v1059 = vpop.xlane.xlu0 %1058
    %v1060 = vsel %vm540, %v1052, -inf
    %1061 = vmax.xlane.f32.xlu0 %v1060
    %v1062 = vpop.xlane.xlu0 %1061
    %v1063 = vsub.f32 -inf, %v1059
    %v1064 = vsub.f32 -inf, %v1062
    %v1065 = vmul.f32 %v1063, 1.442695
    %v1066 = vpow.pop %v1065
    %v1067 = vmul.f32 %v1064, 1.442695
    %v1068 = vpow.pop %v1067
    %v1069 = vsub.f32 %v996, %v1059
    %v1070 = vsub.f32 %v1052, %v1062
    %v1071 = vmul.f32 %v1069, 1.442695
    %v1072 = vpow.pop %v1071
    %v1073 = vmul.f32 %v1070, 1.442695
    %v1074 = vpow.pop %v1073
    %v1075 = vmul.f32 %v1066, 0.0
    %v1076 = vmul.f32 %v1068, 0.0
    %v1077 = vsel %vm540, %v1072, 0.0
    %1078 = vadd.xlane.f32.xlu0 %v1077
    %v1079 = vpop.xlane.xlu0 %1078
    %v1080 = vsel %vm540, %v1074, 0.0
    %1081 = vadd.xlane.f32.xlu0 %v1080
    %v1082 = vpop.xlane.xlu0 %1081
    %v1083 = vadd.f32 %v1075, %v1079
    %v1084 = vadd.f32 %v1076, %v1082
    %v1085 = vpack.c.bf16 %v1072, %v1072
    %v1086 = vpack.c.bf16 %v1074, %v1074
    %v1088 = vunpack.c.l.b16 %v943
    %v1089 = vpack.c.b16 %v1088, %v1088
    %1090 = vrot.lane.b32.xlu0 %v1089, 96
    %v1091 = vpop.permute.xlu0 %1090
    %v1093 = vsel %vm540, %v1085, 0
    %v1096 = vsel %vm574, %v1091, 0
    %1098 = vmatprep.subr.bf16.mxu0 0
    %1099 = vmatpush1.bf16.msra.mxu0 0
    %1100 = vmatprep.subr.bf16.mxu0 0
    %1101 = vmatpush1.bf16.msra.mxu0 0
    %1102 = vmatprep.subr.bf16.mxu0 0
    %1103 = vmatpush1.bf16.msra.mxu0 0
    %1104 = vmatprep.subr.bf16.mxu0 0
    %1105 = vmatpush1.bf16.msra.mxu0 0
    %1106 = vmatprep.subr.bf16.mxu0 0
    %1107 = vmatpush1.bf16.msra.mxu0 0
    %1108 = vmatprep.subr.bf16.mxu0 0
    %1109 = vmatpush1.bf16.msra.mxu0 0
    %1110 = vmatprep.subr.bf16.mxu0 0
    %1111 = vmatpush1.bf16.msra.mxu0 0
    %1112 = vmatprep.subr.bf16.mxu0 0
    %1113 = vmatpush1.bf16.msra.mxu0 %v1096
    %1114 = vmatprep.subr.bf16.mxu0 0
    %1115 = vmatpush2.bf16.msra.mxu0 0
    %1116 = vmatprep.subr.bf16.mxu0 0
    %1117 = vmatpush2.bf16.msra.mxu0 0
    %1118 = vmatprep.subr.bf16.mxu0 0
    %1119 = vmatpush2.bf16.msra.mxu0 0
    %1120 = vmatprep.subr.bf16.mxu0 0
    %1121 = vmatpush2.bf16.msra.mxu0 0
    %1122 = vmatprep.subr.bf16.mxu0 0
    %1123 = vmatpush2.bf16.msra.mxu0 0
    %1124 = vmatprep.subr.bf16.mxu0 0
    %1125 = vmatpush2.bf16.msra.mxu0 0
    %1126 = vmatprep.subr.bf16.mxu0 0
    %1127 = vmatpush2.bf16.msra.mxu0 0
    %1128 = vmatprep.subr.bf16.mxu0 0
    %1129 = vmatpush2.bf16.msra.mxu0 0
    %1130 = vmatprep.mubr.bf16.mxu0 0
    %1131 = vmatmul.mubr.bf16.gmra.mxu0 %v1093
    %v1132 = vpop.f32.mrf.mxu0
    %v1133 = vadd.f32 0.0, %v1132
    %v1134 = vpop.f32.mrf.mxu0
    %v1135 = vpop.f32.mrf.mxu0
    %v1136 = vpop.f32.mrf.mxu0
    %1137 = vdwg.mxu0
    %v1139 = vunpack.c.l.b16 %v944
    %v1140 = vpack.c.b16 %v1139, %v1139
    %1141 = vrot.lane.b32.xlu0 %v1140, 96
    %v1142 = vpop.permute.xlu0 %1141
    %v1144 = vsel %vm540, %v1086, 0
    %v1147 = vsel %vm574, %v1142, 0
    %1149 = vmatprep.subr.bf16.mxu0 0
    %1150 = vmatpush1.bf16.msra.mxu0 0
    %1151 = vmatprep.subr.bf16.mxu0 0
    %1152 = vmatpush1.bf16.msra.mxu0 0
    %1153 = vmatprep.subr.bf16.mxu0 0
    %1154 = vmatpush1.bf16.msra.mxu0 0
    %1155 = vmatprep.subr.bf16.mxu0 0
    %1156 = vmatpush1.bf16.msra.mxu0 0
    %1157 = vmatprep.subr.bf16.mxu0 0
    %1158 = vmatpush1.bf16.msra.mxu0 0
    %1159 = vmatprep.subr.bf16.mxu0 0
    %1160 = vmatpush1.bf16.msra.mxu0 0
    %1161 = vmatprep.subr.bf16.mxu0 0
    %1162 = vmatpush1.bf16.msra.mxu0 0
    %1163 = vmatprep.subr.bf16.mxu0 0
    %1164 = vmatpush1.bf16.msra.mxu0 %v1147
    %1165 = vmatprep.subr.bf16.mxu0 0
    %1166 = vmatpush2.bf16.msra.mxu0 0
    %1167 = vmatprep.subr.bf16.mxu0 0
    %1168 = vmatpush2.bf16.msra.mxu0 0
    %1169 = vmatprep.subr.bf16.mxu0 0
    %1170 = vmatpush2.bf16.msra.mxu0 0
    %1171 = vmatprep.subr.bf16.mxu0 0
    %1172 = vmatpush2.bf16.msra.mxu0 0
    %1173 = vmatprep.subr.bf16.mxu0 0
    %1174 = vmatpush2.bf16.msra.mxu0 0
    %1175 = vmatprep.subr.bf16.mxu0 0
    %1176 = vmatpush2.bf16.msra.mxu0 0
    %1177 = vmatprep.subr.bf16.mxu0 0
    %1178 = vmatpush2.bf16.msra.mxu0 0
    %1179 = vmatprep.subr.bf16.mxu0 0
    %1180 = vmatpush2.bf16.msra.mxu0 0
    %1181 = vmatprep.mubr.bf16.mxu0 0
    %1182 = vmatmul.mubr.bf16.gmra.mxu0 %v1144
    %v1183 = vpop.f32.mrf.mxu0
    %v1184 = vadd.f32 0.0, %v1183
    %v1185 = vpop.f32.mrf.mxu0
    %v1186 = vpop.f32.mrf.mxu0
    %v1187 = vpop.f32.mrf.mxu0
    %1188 = vdwg.mxu0
    %v1189 = vadd.f32 %v1075, %v1133
    %v1190 = vadd.f32 %v1076, %v1184
    %v1191 = vrcp.pop %v1083
    %v1192 = vrcp.pop %v1084
    %v1193 = vmul.f32 %v1189, %v1191
    %v1194 = vmul.f32 %v1190, %v1192
    %1197 = vrot.lane.b32.xlu0 %v1193, 32
    %v1198 = vpop.permute.xlu0 %1197
    %1199 = vrot.lane.b32.xlu0 %v1194, 32
    %v1200 = vpop.permute.xlu0 %1199
    %vm1203 = vcmask 392448
    %1204 = vst.msk [vmem:[#allocation5] sm:$0xff] %vm1203, %v1198
    %1205 = vst.msk [vmem:[#allocation5 + $0x8] sm:$0xff] %vm1203, %v1200
    %v1206 = vld [vmem:[#allocation2] sm:$0xf]
    %v1207 = vld [vmem:[#allocation2 + $0x4] sm:$0xf]
    %v1208 = vld [vmem:[#allocation3] sm:$0xf]
    %v1209 = vld [vmem:[#allocation3 + $0x4] sm:$0xf]
    %v1210 = vld [vmem:[#allocation4] sm:$0xf]
    %v1211 = vld [vmem:[#allocation4 + $0x4] sm:$0xf]
    %v1213 = vunpack.c.l.b16 %v1206
    %v1214 = vpack.c.b16 %v1213, %v1213
    %1215 = vrot.lane.b32.xlu0 %v1214, 80
    %v1216 = vpop.permute.xlu0 %1215
    %v1218 = vunpack.c.l.b16 %v1208
    %v1219 = vpack.c.b16 %v1218, %v1218
    %1220 = vrot.lane.b32.xlu0 %v1219, 80
    %v1221 = vpop.permute.xlu0 %1220
    %v1223 = vsel %vm447, %v1216, 0
    %v1226 = vsel %vm447, %v1221, 0
    %1228 = vmatprep.subr.bf16.mxu0 0
    %1229 = vmatpush1.bf16.xpose.msra.mxu0 0
    %1230 = vmatprep.subr.bf16.mxu0 0
    %1231 = vmatpush1.bf16.xpose.msra.mxu0 0
    %1232 = vmatprep.subr.bf16.mxu0 0
    %1233 = vmatpush1.bf16.xpose.msra.mxu0 0
    %1234 = vmatprep.subr.bf16.mxu0 0
    %1235 = vmatpush1.bf16.xpose.msra.mxu0 0
    %1236 = vmatprep.subr.bf16.mxu0 0
    %1237 = vmatpush1.bf16.xpose.msra.mxu0 0
    %1238 = vmatprep.subr.bf16.mxu0 0
    %1239 = vmatpush1.bf16.xpose.msra.mxu0 0
    %1240 = vmatprep.subr.bf16.mxu0 0
    %1241 = vmatpush1.bf16.xpose.msra.mxu0 0
    %1242 = vmatprep.subr.bf16.mxu0 0
    %1243 = vmatpush1.bf16.xpose.msra.mxu0 %v1226
    %1244 = vmatprep.subr.bf16.mxu0 0
    %1245 = vmatpush2.bf16.xpose.msra.mxu0 0
    %1246 = vmatprep.subr.bf16.mxu0 0
    %1247 = vmatpush2.bf16.xpose.msra.mxu0 0
    %1248 = vmatprep.subr.bf16.mxu0 0
    %1249 = vmatpush2.bf16.xpose.msra.mxu0 0
    %1250 = vmatprep.subr.bf16.mxu0 0
    %1251 = vmatpush2.bf16.xpose.msra.mxu0 0
    %1252 = vmatprep.subr.bf16.mxu0 0
    %1253 = vmatpush2.bf16.xpose.msra.mxu0 0
    %1254 = vmatprep.subr.bf16.mxu0 0
    %1255 = vmatpush2.bf16.xpose.msra.mxu0 0
    %1256 = vmatprep.subr.bf16.mxu0 0
    %1257 = vmatpush2.bf16.xpose.msra.mxu0 0
    %1258 = vmatprep.subr.bf16.mxu0 0
    %1259 = vmatpush2.bf16.xpose.msra.mxu0 0
    %1260 = vmatprep.mubr.bf16.mxu0 0
    %1261 = vmatmul.mubr.bf16.gmra.mxu0 %v1223
    %v1262 = vpop.f32.mrf.mxu0
    %v1263 = vadd.f32 0.0, %v1262
    %v1264 = vpop.f32.mrf.mxu0
    %v1265 = vpop.f32.mrf.mxu0
    %v1266 = vpop.f32.mrf.mxu0
    %1267 = vdwg.mxu0
    %v1269 = vunpack.c.l.b16 %v1207
    %v1270 = vpack.c.b16 %v1269, %v1269
    %1271 = vrot.lane.b32.xlu0 %v1270, 80
    %v1272 = vpop.permute.xlu0 %1271
    %v1274 = vunpack.c.l.b16 %v1209
    %v1275 = vpack.c.b16 %v1274, %v1274
    %1276 = vrot.lane.b32.xlu0 %v1275, 80
    %v1277 = vpop.permute.xlu0 %1276
    %v1279 = vsel %vm447, %v1272, 0
    %v1282 = vsel %vm447, %v1277, 0
    %1284 = vmatprep.subr.bf16.mxu0 0
    %1285 = vmatpush1.bf16.xpose.msra.mxu0 0
    %1286 = vmatprep.subr.bf16.mxu0 0
    %1287 = vmatpush1.bf16.xpose.msra.mxu0 0
    %1288 = vmatprep.subr.bf16.mxu0 0
    %1289 = vmatpush1.bf16.xpose.msra.mxu0 0
    %1290 = vmatprep.subr.bf16.mxu0 0
    %1291 = vmatpush1.bf16.xpose.msra.mxu0 0
    %1292 = vmatprep.subr.bf16.mxu0 0
    %1293 = vmatpush1.bf16.xpose.msra.mxu0 0
    %1294 = vmatprep.subr.bf16.mxu0 0
    %1295 = vmatpush1.bf16.xpose.msra.mxu0 0
    %1296 = vmatprep.subr.bf16.mxu0 0
    %1297 = vmatpush1.bf16.xpose.msra.mxu0 0
    %1298 = vmatprep.subr.bf16.mxu0 0
    %1299 = vmatpush1.bf16.xpose.msra.mxu0 %v1282
    %1300 = vmatprep.subr.bf16.mxu0 0
    %1301 = vmatpush2.bf16.xpose.msra.mxu0 0
    %1302 = vmatprep.subr.bf16.mxu0 0
    %1303 = vmatpush2.bf16.xpose.msra.mxu0 0
    %1304 = vmatprep.subr.bf16.mxu0 0
    %1305 = vmatpush2.bf16.xpose.msra.mxu0 0
    %1306 = vmatprep.subr.bf16.mxu0 0
    %1307 = vmatpush2.bf16.xpose.msra.mxu0 0
    %1308 = vmatprep.subr.bf16.mxu0 0
    %1309 = vmatpush2.bf16.xpose.msra.mxu0 0
    %1310 = vmatprep.subr.bf16.mxu0 0
    %1311 = vmatpush2.bf16.xpose.msra.mxu0 0
    %1312 = vmatprep.subr.bf16.mxu0 0
    %1313 = vmatpush2.bf16.xpose.msra.mxu0 0
    %1314 = vmatprep.subr.bf16.mxu0 0
    %1315 = vmatpush2.bf16.xpose.msra.mxu0 0
    %1316 = vmatprep.mubr.bf16.mxu0 0
    %1317 = vmatmul.mubr.bf16.gmra.mxu0 %v1279
    %v1318 = vpop.f32.mrf.mxu0
    %v1319 = vadd.f32 0.0, %v1318
    %v1320 = vpop.f32.mrf.mxu0
    %v1321 = vpop.f32.mrf.mxu0
    %v1322 = vpop.f32.mrf.mxu0
    %1323 = vdwg.mxu0
    %v1324 = vsel %vm540, %v1263, -inf
    %1325 = vmax.xlane.f32.xlu0 %v1324
    %v1326 = vpop.xlane.xlu0 %1325
    %v1327 = vsel %vm540, %v1319, -inf
    %1328 = vmax.xlane.f32.xlu0 %v1327
    %v1329 = vpop.xlane.xlu0 %1328
    %v1330 = vsub.f32 -inf, %v1326
    %v1331 = vsub.f32 -inf, %v1329
    %v1332 = vmul.f32 %v1330, 1.442695
    %v1333 = vpow.pop %v1332
    %v1334 = vmul.f32 %v1331, 1.442695
    %v1335 = vpow.pop %v1334
    %v1336 = vsub.f32 %v1263, %v1326
    %v1337 = vsub.f32 %v1319, %v1329
    %v1338 = vmul.f32 %v1336, 1.442695
    %v1339 = vpow.pop %v1338
    %v1340 = vmul.f32 %v1337, 1.442695
    %v1341 = vpow.pop %v1340
    %v1342 = vmul.f32 %v1333, 0.0
    %v1343 = vmul.f32 %v1335, 0.0
    %v1344 = vsel %vm540, %v1339, 0.0
    %1345 = vadd.xlane.f32.xlu0 %v1344
    %v1346 = vpop.xlane.xlu0 %1345
    %v1347 = vsel %vm540, %v1341, 0.0
    %1348 = vadd.xlane.f32.xlu0 %v1347
    %v1349 = vpop.xlane.xlu0 %1348
    %v1350 = vadd.f32 %v1342, %v1346
    %v1351 = vadd.f32 %v1343, %v1349
    %v1352 = vpack.c.bf16 %v1339, %v1339
    %v1353 = vpack.c.bf16 %v1341, %v1341
    %v1355 = vunpack.c.l.b16 %v1210
    %v1356 = vpack.c.b16 %v1355, %v1355
    %1357 = vrot.lane.b32.xlu0 %v1356, 80
    %v1358 = vpop.permute.xlu0 %1357
    %v1360 = vsel %vm540, %v1352, 0
    %v1363 = vsel %vm574, %v1358, 0
    %1365 = vmatprep.subr.bf16.mxu0 0
    %1366 = vmatpush1.bf16.msra.mxu0 0
    %1367 = vmatprep.subr.bf16.mxu0 0
    %1368 = vmatpush1.bf16.msra.mxu0 0
    %1369 = vmatprep.subr.bf16.mxu0 0
    %1370 = vmatpush1.bf16.msra.mxu0 0
    %1371 = vmatprep.subr.bf16.mxu0 0
    %1372 = vmatpush1.bf16.msra.mxu0 0
    %1373 = vmatprep.subr.bf16.mxu0 0
    %1374 = vmatpush1.bf16.msra.mxu0 0
    %1375 = vmatprep.subr.bf16.mxu0 0
    %1376 = vmatpush1.bf16.msra.mxu0 0
    %1377 = vmatprep.subr.bf16.mxu0 0
    %1378 = vmatpush1.bf16.msra.mxu0 0
    %1379 = vmatprep.subr.bf16.mxu0 0
    %1380 = vmatpush1.bf16.msra.mxu0 %v1363
    %1381 = vmatprep.subr.bf16.mxu0 0
    %1382 = vmatpush2.bf16.msra.mxu0 0
    %1383 = vmatprep.subr.bf16.mxu0 0
    %1384 = vmatpush2.bf16.msra.mxu0 0
    %1385 = vmatprep.subr.bf16.mxu0 0
    %1386 = vmatpush2.bf16.msra.mxu0 0
    %1387 = vmatprep.subr.bf16.mxu0 0
    %1388 = vmatpush2.bf16.msra.mxu0 0
    %1389 = vmatprep.subr.bf16.mxu0 0
    %1390 = vmatpush2.bf16.msra.mxu0 0
    %1391 = vmatprep.subr.bf16.mxu0 0
    %1392 = vmatpush2.bf16.msra.mxu0 0
    %1393 = vmatprep.subr.bf16.mxu0 0
    %1394 = vmatpush2.bf16.msra.mxu0 0
    %1395 = vmatprep.subr.bf16.mxu0 0
    %1396 = vmatpush2.bf16.msra.mxu0 0
    %1397 = vmatprep.mubr.bf16.mxu0 0
    %1398 = vmatmul.mubr.bf16.gmra.mxu0 %v1360
    %v1399 = vpop.f32.mrf.mxu0
    %v1400 = vadd.f32 0.0, %v1399
    %v1401 = vpop.f32.mrf.mxu0
    %v1402 = vpop.f32.mrf.mxu0
    %v1403 = vpop.f32.mrf.mxu0
    %1404 = vdwg.mxu0
    %v1406 = vunpack.c.l.b16 %v1211
    %v1407 = vpack.c.b16 %v1406, %v1406
    %1408 = vrot.lane.b32.xlu0 %v1407, 80
    %v1409 = vpop.permute.xlu0 %1408
    %v1411 = vsel %vm540, %v1353, 0
    %v1414 = vsel %vm574, %v1409, 0
    %1416 = vmatprep.subr.bf16.mxu0 0
    %1417 = vmatpush1.bf16.msra.mxu0 0
    %1418 = vmatprep.subr.bf16.mxu0 0
    %1419 = vmatpush1.bf16.msra.mxu0 0
    %1420 = vmatprep.subr.bf16.mxu0 0
    %1421 = vmatpush1.bf16.msra.mxu0 0
    %1422 = vmatprep.subr.bf16.mxu0 0
    %1423 = vmatpush1.bf16.msra.mxu0 0
    %1424 = vmatprep.subr.bf16.mxu0 0
    %1425 = vmatpush1.bf16.msra.mxu0 0
    %1426 = vmatprep.subr.bf16.mxu0 0
    %1427 = vmatpush1.bf16.msra.mxu0 0
    %1428 = vmatprep.subr.bf16.mxu0 0
    %1429 = vmatpush1.bf16.msra.mxu0 0
    %1430 = vmatprep.subr.bf16.mxu0 0
    %1431 = vmatpush1.bf16.msra.mxu0 %v1414
    %1432 = vmatprep.subr.bf16.mxu0 0
    %1433 = vmatpush2.bf16.msra.mxu0 0
    %1434 = vmatprep.subr.bf16.mxu0 0
    %1435 = vmatpush2.bf16.msra.mxu0 0
    %1436 = vmatprep.subr.bf16.mxu0 0
    %1437 = vmatpush2.bf16.msra.mxu0 0
    %1438 = vmatprep.subr.bf16.mxu0 0
    %1439 = vmatpush2.bf16.msra.mxu0 0
    %1440 = vmatprep.subr.bf16.mxu0 0
    %1441 = vmatpush2.bf16.msra.mxu0 0
    %1442 = vmatprep.subr.bf16.mxu0 0
    %1443 = vmatpush2.bf16.msra.mxu0 0
    %1444 = vmatprep.subr.bf16.mxu0 0
    %1445 = vmatpush2.bf16.msra.mxu0 0
    %1446 = vmatprep.subr.bf16.mxu0 0
    %1447 = vmatpush2.bf16.msra.mxu0 0
    %1448 = vmatprep.mubr.bf16.mxu0 0
    %1449 = vmatmul.mubr.bf16.gmra.mxu0 %v1411
    %v1450 = vpop.f32.mrf.mxu0
    %v1451 = vadd.f32 0.0, %v1450
    %v1452 = vpop.f32.mrf.mxu0
    %v1453 = vpop.f32.mrf.mxu0
    %v1454 = vpop.f32.mrf.mxu0
    %1455 = vdwg.mxu0
    %v1456 = vadd.f32 %v1342, %v1400
    %v1457 = vadd.f32 %v1343, %v1451
    %v1458 = vrcp.pop %v1350
    %v1459 = vrcp.pop %v1351
    %v1460 = vmul.f32 %v1456, %v1458
    %v1461 = vmul.f32 %v1457, %v1459
    %1464 = vrot.lane.b32.xlu0 %v1460, 48
    %v1465 = vpop.permute.xlu0 %1464
    %1466 = vrot.lane.b32.xlu0 %v1461, 48
    %v1467 = vpop.permute.xlu0 %1466
    %vm1470 = vcmask 523648
    %1471 = vst.msk [vmem:[#allocation5] sm:$0xff] %vm1470, %v1465
    %1472 = vst.msk [vmem:[#allocation5 + $0x8] sm:$0xff] %vm1470, %v1467
    %v1473 = vld [vmem:[#allocation5] sm:$0xff]
    %v1474 = vld [vmem:[#allocation5 + $0x8] sm:$0xff]
    %v1475 = vpack.c.bf16 %v1474, %v1473
    %v1476 = vld [vmem:[#allocation12] sm:$0xf]
    %v1477 = vld [vmem:[#allocation12 + $0x4] sm:$0xf]
    %v1478 = vld [vmem:[#allocation12 + $0x8] sm:$0xf]
    %v1479 = vld [vmem:[#allocation12 + $0xc] sm:$0xf]
    %v1480 = vld [vmem:[#allocation12 + $0x10] sm:$0xf]
    %v1481 = vld [vmem:[#allocation12 + $0x14] sm:$0xf]
    %v1482 = vld [vmem:[#allocation12 + $0x18] sm:$0xf]
    %v1483 = vld [vmem:[#allocation12 + $0x1c] sm:$0xf]
    %v1492 = vunpack.c.l.b16 %v1476
    %v1493 = vunpack.c.l.b16 %v1477
    %v1494 = vunpack.c.l.b16 %v1478
    %v1495 = vunpack.c.l.b16 %v1479
    %v1496 = vunpack.c.l.b16 %v1480
    %v1497 = vunpack.c.l.b16 %v1481
    %v1498 = vunpack.c.l.b16 %v1482
    %v1499 = vunpack.c.l.b16 %v1483
    %v1500 = vpack.c.b16 %v1493, %v1492
    %v1501 = vpack.c.b16 %v1495, %v1494
    %v1502 = vpack.c.b16 %v1497, %v1496
    %v1503 = vpack.c.b16 %v1499, %v1498
    %v1509 = vsel %vm119, %v1475, 0
    %1511 = vmatprep.subr.bf16.mxu0 0
    %1512 = vmatpush1.bf16.msra.mxu0 0
    %1513 = vmatprep.subr.bf16.mxu0 0
    %1514 = vmatpush1.bf16.msra.mxu0 0
    %1515 = vmatprep.subr.bf16.mxu0 0
    %1516 = vmatpush1.bf16.msra.mxu0 0
    %1517 = vmatprep.subr.bf16.mxu0 0
    %1518 = vmatpush1.bf16.msra.mxu0 0
    %1519 = vmatprep.subr.bf16.mxu0 0
    %1520 = vmatpush1.bf16.msra.mxu0 %v1503
    %1521 = vmatprep.subr.bf16.mxu0 0
    %1522 = vmatpush1.bf16.msra.mxu0 %v1502
    %1523 = vmatprep.subr.bf16.mxu0 0
    %1524 = vmatpush1.bf16.msra.mxu0 %v1501
    %1525 = vmatprep.subr.bf16.mxu0 0
    %1526 = vmatpush1.bf16.msra.mxu0 %v1500
    %1527 = vmatprep.subr.bf16.mxu0 0
    %1528 = vmatpush2.bf16.msra.mxu0 0
    %1529 = vmatprep.subr.bf16.mxu0 0
    %1530 = vmatpush2.bf16.msra.mxu0 0
    %1531 = vmatprep.subr.bf16.mxu0 0
    %1532 = vmatpush2.bf16.msra.mxu0 0
    %1533 = vmatprep.subr.bf16.mxu0 0
    %1534 = vmatpush2.bf16.msra.mxu0 0
    %1535 = vmatprep.subr.bf16.mxu0 0
    %1536 = vmatpush2.bf16.msra.mxu0 0
    %1537 = vmatprep.subr.bf16.mxu0 0
    %1538 = vmatpush2.bf16.msra.mxu0 0
    %1539 = vmatprep.subr.bf16.mxu0 0
    %1540 = vmatpush2.bf16.msra.mxu0 0
    %1541 = vmatprep.subr.bf16.mxu0 0
    %1542 = vmatpush2.bf16.msra.mxu0 0
    %1543 = vmatprep.mubr.bf16.mxu0 0
    %1544 = vmatmul.mubr.bf16.gmra.mxu0 %v1509
    %v1545 = vpop.f32.mrf.mxu0
    %v1546 = vadd.f32 0.0, %v1545
    %v1547 = vpop.f32.mrf.mxu0
    %v1548 = vpop.f32.mrf.mxu0
    %v1549 = vadd.f32 0.0, %v1548
    %v1550 = vpop.f32.mrf.mxu0
    %1551 = vdwg.mxu0
    %v1552 = vadd.f32 %v111, %v1546
    %v1553 = vadd.f32 %v112, %v1549
    %v1554 = vld [vmem:[%s8] sm:$0x1]
    %v1555 = vld [vmem:[%s9] sm:$0x1]
    %v1556 = vsel %vm119, %v1552, 0.0
    %1557 = vadd.xlane.f32.xlu0 %v1556
    %v1558 = vpop.xlane.xlu0 %1557
    %v1559 = vsel %vm119, %v1553, 0.0
    %1560 = vadd.xlane.f32.xlu0 %v1559
    %v1561 = vpop.xlane.xlu0 %1560
    %v1562 = vmul.f32 %v1558, %v126
    %v1563 = vmul.f32 %v1561, %v126
    %v1564 = vmul.f32 %v1552, %v1552
    %v1565 = vmul.f32 %v1553, %v1553
    %v1566 = vsel %vm119, %v1564, 0.0
    %1567 = vadd.xlane.f32.xlu0 %v1566
    %v1568 = vpop.xlane.xlu0 %1567
    %v1569 = vsel %vm119, %v1565, 0.0
    %1570 = vadd.xlane.f32.xlu0 %v1569
    %v1571 = vpop.xlane.xlu0 %1570
    %v1572 = vmul.f32 %v1568, %v126
    %v1573 = vmul.f32 %v1571, %v126
    %v1574 = vmul.f32 %v1562, %v1562
    %v1575 = vmul.f32 %v1563, %v1563
    %v1576 = vsub.f32 %v1572, %v1574
    %v1577 = vsub.f32 %v1573, %v1575
    %v1578 = vsub.f32 %v1552, %v1562
    %v1579 = vsub.f32 %v1553, %v1563
    %v1580 = vadd.f32 %v1576, 1e-05
    %v1581 = vadd.f32 %v1577, 1e-05
    %v1582 = vrsqrt.pop %v1580
    %v1583 = vrsqrt.pop %v1581
    %v1584 = vmul.f32 %v1578, %v1582
    %v1585 = vmul.f32 %v1579, %v1583
    %v1587 = vlaneseq
    %v1588 = vshrl.u32 %v1587, 7
    %v1589 = vsub.s32 0, %v1588
    %v1590 = vrot.slane %v1554, %v1589
    %v1592 = vmul.f32 %v1584, %v1590
    %v1593 = vmul.f32 %v1585, %v1590
    %v1595 = vlaneseq
    %v1596 = vshrl.u32 %v1595, 7
    %v1597 = vsub.s32 0, %v1596
    %v1598 = vrot.slane %v1555, %v1597
    %v1600 = vadd.f32 %v1592, %v1598
    %v1601 = vadd.f32 %v1593, %v1598
    %v1602 = vpack.c.bf16 %v1601, %v1600
    %v1603 = vld [vmem:[#allocation14] sm:$0xff]
    %v1604 = vld [vmem:[#allocation14 + $0x8] sm:$0xff]
    %v1605 = vld [vmem:[#allocation14 + $0x10] sm:$0xff]
    %v1606 = vld [vmem:[#allocation14 + $0x18] sm:$0xff]
    %v1607 = vld [vmem:[#allocation14 + $0x20] sm:$0xff]
    %v1608 = vld [vmem:[#allocation14 + $0x28] sm:$0xff]
    %v1609 = vld [vmem:[#allocation14 + $0x30] sm:$0xff]
    %v1610 = vld [vmem:[#allocation14 + $0x38] sm:$0xff]
    %v1619 = vunpack.c.l.b16 %v1603
    %v1620 = vunpack.c.h.b16 %v1603
    %v1621 = vunpack.c.l.b16 %v1604
    %v1622 = vunpack.c.h.b16 %v1604
    %v1623 = vunpack.c.l.b16 %v1605
    %v1624 = vunpack.c.h.b16 %v1605
    %v1625 = vunpack.c.l.b16 %v1606
    %v1626 = vunpack.c.h.b16 %v1606
    %v1627 = vunpack.c.l.b16 %v1607
    %v1628 = vunpack.c.h.b16 %v1607
    %v1629 = vunpack.c.l.b16 %v1608
    %v1630 = vunpack.c.h.b16 %v1608
    %v1631 = vunpack.c.l.b16 %v1609
    %v1632 = vunpack.c.h.b16 %v1609
    %v1633 = vunpack.c.l.b16 %v1610
    %v1634 = vunpack.c.h.b16 %v1610
    %v1635 = vpack.c.b16 %v1621, %v1619
    %v1636 = vpack.c.b16 %v1622, %v1620
    %v1637 = vpack.c.b16 %v1625, %v1623
    %v1638 = vpack.c.b16 %v1626, %v1624
    %v1639 = vpack.c.b16 %v1629, %v1627
    %v1640 = vpack.c.b16 %v1630, %v1628
    %v1641 = vpack.c.b16 %v1633, %v1631
    %v1642 = vpack.c.b16 %v1634, %v1632
    %v1652 = vsel %vm119, %v1602, 0
    %1654 = vmatprep.subr.bf16.mxu0 0
    %1655 = vmatpush1.bf16.msra.mxu0 0
    %1656 = vmatprep.subr.bf16.mxu0 0
    %1657 = vmatpush1.bf16.msra.mxu0 0
    %1658 = vmatprep.subr.bf16.mxu0 0
    %1659 = vmatpush1.bf16.msra.mxu0 0
    %1660 = vmatprep.subr.bf16.mxu0 0
    %1661 = vmatpush1.bf16.msra.mxu0 0
    %1662 = vmatprep.subr.bf16.mxu0 %v1642
    %1663 = vmatpush1.bf16.msra.mxu0 %v1641
    %1664 = vmatprep.subr.bf16.mxu0 %v1640
    %1665 = vmatpush1.bf16.msra.mxu0 %v1639
    %1666 = vmatprep.subr.bf16.mxu0 %v1638
    %1667 = vmatpush1.bf16.msra.mxu0 %v1637
    %1668 = vmatprep.subr.bf16.mxu0 %v1636
    %1669 = vmatpush1.bf16.msra.mxu0 %v1635
    %1670 = vmatprep.subr.bf16.mxu0 0
    %1671 = vmatpush2.bf16.msra.mxu0 0
    %1672 = vmatprep.subr.bf16.mxu0 0
    %1673 = vmatpush2.bf16.msra.mxu0 0
    %1674 = vmatprep.subr.bf16.mxu0 0
    %1675 = vmatpush2.bf16.msra.mxu0 0
    %1676 = vmatprep.subr.bf16.mxu0 0
    %1677 = vmatpush2.bf16.msra.mxu0 0
    %1678 = vmatprep.subr.bf16.mxu0 0
    %1679 = vmatpush2.bf16.msra.mxu0 0
    %1680 = vmatprep.subr.bf16.mxu0 0
    %1681 = vmatpush2.bf16.msra.mxu0 0
    %1682 = vmatprep.subr.bf16.mxu0 0
    %1683 = vmatpush2.bf16.msra.mxu0 0
    %1684 = vmatprep.subr.bf16.mxu0 0
    %1685 = vmatpush2.bf16.msra.mxu0 0
    %1686 = vmatprep.mubr.bf16.mxu0 0
    %1687 = vmatmul.mubr.bf16.gmra.mxu0 %v1652
    %v1688 = vpop.f32.mrf.mxu0
    %v1689 = vadd.f32 0.0, %v1688
    %v1690 = vpop.f32.mrf.mxu0
    %v1691 = vadd.f32 0.0, %v1690
    %v1692 = vpop.f32.mrf.mxu0
    %v1693 = vadd.f32 0.0, %v1692
    %v1694 = vpop.f32.mrf.mxu0
    %v1695 = vadd.f32 0.0, %v1694
    %1696 = vdwg.mxu0
    %v1697 = vxor.u32 %v1689, 2147483648
    %v1698 = vxor.u32 %v1693, 2147483648
    %v1699 = vmul.f32 %v1697, 1.442695
    %v1700 = vpow.pop %v1699
    %v1701 = vmul.f32 %v1698, 1.442695
    %v1702 = vpow.pop %v1701
    %v1703 = vadd.f32 %v1700, 1.0
    %v1704 = vadd.f32 %v1702, 1.0
    %v1705 = vrcp.pop %v1703
    %v1706 = vmul.f32 1.0, %v1705
    %v1707 = vrcp.pop %v1704
    %v1708 = vmul.f32 1.0, %v1707
    %v1709 = vmul.f32 %v1689, %v1706
    %v1710 = vmul.f32 %v1693, %v1708
    %v1711 = vmul.f32 %v1709, %v1691
    %v1712 = vmul.f32 %v1710, %v1695
    %v1713 = vpack.c.bf16 %v1712, %v1711
    %v1714 = vld [vmem:[%s11] sm:$0xf]
    %v1715 = vld [vmem:[%s11 + $0x4] sm:$0xf]
    %v1716 = vld [vmem:[%s11 + $0x8] sm:$0xf]
    %v1717 = vld [vmem:[%s11 + $0xc] sm:$0xf]
    %v1718 = vld [vmem:[%s11 + $0x10] sm:$0xf]
    %v1719 = vld [vmem:[%s11 + $0x14] sm:$0xf]
    %v1720 = vld [vmem:[%s11 + $0x18] sm:$0xf]
    %v1721 = vld [vmem:[%s11 + $0x1c] sm:$0xf]
    %v1722 = vld [vmem:[%s11 + $0x20] sm:$0xf]
    %v1723 = vld [vmem:[%s11 + $0x24] sm:$0xf]
    %v1724 = vld [vmem:[%s11 + $0x28] sm:$0xf]
    %v1725 = vld [vmem:[%s11 + $0x2c] sm:$0xf]
    %v1726 = vld [vmem:[%s11 + $0x30] sm:$0xf]
    %v1727 = vld [vmem:[%s11 + $0x34] sm:$0xf]
    %v1728 = vld [vmem:[%s11 + $0x38] sm:$0xf]
    %v1729 = vld [vmem:[%s11 + $0x3c] sm:$0xf]
    %v1746 = vunpack.c.l.b16 %v1714
    %v1747 = vunpack.c.l.b16 %v1715
    %v1748 = vunpack.c.l.b16 %v1716
    %v1749 = vunpack.c.l.b16 %v1717
    %v1750 = vunpack.c.l.b16 %v1718
    %v1751 = vunpack.c.l.b16 %v1719
    %v1752 = vunpack.c.l.b16 %v1720
    %v1753 = vunpack.c.l.b16 %v1721
    %v1754 = vunpack.c.l.b16 %v1722
    %v1755 = vunpack.c.l.b16 %v1723
    %v1756 = vunpack.c.l.b16 %v1724
    %v1757 = vunpack.c.l.b16 %v1725
    %v1758 = vunpack.c.l.b16 %v1726
    %v1759 = vunpack.c.l.b16 %v1727
    %v1760 = vunpack.c.l.b16 %v1728
    %v1761 = vunpack.c.l.b16 %v1729
    %v1762 = vpack.c.b16 %v1747, %v1746
    %v1763 = vpack.c.b16 %v1749, %v1748
    %v1764 = vpack.c.b16 %v1751, %v1750
    %v1765 = vpack.c.b16 %v1753, %v1752
    %v1766 = vpack.c.b16 %v1755, %v1754
    %v1767 = vpack.c.b16 %v1757, %v1756
    %v1768 = vpack.c.b16 %v1759, %v1758
    %v1769 = vpack.c.b16 %v1761, %v1760
    %1778 = vmatprep.subr.bf16.mxu0 0
    %1779 = vmatpush1.bf16.msra.mxu0 %v1769
    %1780 = vmatprep.subr.bf16.mxu0 0
    %1781 = vmatpush1.bf16.msra.mxu0 %v1768
    %1782 = vmatprep.subr.bf16.mxu0 0
    %1783 = vmatpush1.bf16.msra.mxu0 %v1767
    %1784 = vmatprep.subr.bf16.mxu0 0
    %1785 = vmatpush1.bf16.msra.mxu0 %v1766
    %1786 = vmatprep.subr.bf16.mxu0 0
    %1787 = vmatpush1.bf16.msra.mxu0 %v1765
    %1788 = vmatprep.subr.bf16.mxu0 0
    %1789 = vmatpush1.bf16.msra.mxu0 %v1764
    %1790 = vmatprep.subr.bf16.mxu0 0
    %1791 = vmatpush1.bf16.msra.mxu0 %v1763
    %1792 = vmatprep.subr.bf16.mxu0 0
    %1793 = vmatpush1.bf16.msra.mxu0 %v1762
    %1794 = vmatprep.subr.bf16.mxu0 0
    %1795 = vmatpush2.bf16.msra.mxu0 0
    %1796 = vmatprep.subr.bf16.mxu0 0
    %1797 = vmatpush2.bf16.msra.mxu0 0
    %1798 = vmatprep.subr.bf16.mxu0 0
    %1799 = vmatpush2.bf16.msra.mxu0 0
    %1800 = vmatprep.subr.bf16.mxu0 0
    %1801 = vmatpush2.bf16.msra.mxu0 0
    %1802 = vmatprep.subr.bf16.mxu0 0
    %1803 = vmatpush2.bf16.msra.mxu0 0
    %1804 = vmatprep.subr.bf16.mxu0 0
    %1805 = vmatpush2.bf16.msra.mxu0 0
    %1806 = vmatprep.subr.bf16.mxu0 0
    %1807 = vmatpush2.bf16.msra.mxu0 0
    %1808 = vmatprep.subr.bf16.mxu0 0
    %1809 = vmatpush2.bf16.msra.mxu0 0
    %1810 = vmatprep.mubr.bf16.mxu0 0
    %1811 = vmatmul.mubr.bf16.gmra.mxu0 %v1713
    %v1812 = vpop.f32.mrf.mxu0
    %v1813 = vadd.f32 0.0, %v1812
    %v1814 = vpop.f32.mrf.mxu0
    %v1815 = vpop.f32.mrf.mxu0
    %v1816 = vadd.f32 0.0, %v1815
    %v1817 = vpop.f32.mrf.mxu0
    %1818 = vdwg.mxu0
    %v1819 = vadd.f32 %v1552, %v1813
    %v1820 = vadd.f32 %v1553, %v1816
    %1821 = vst.msk [vmem:[#allocation15] sm:$0xff] %vm119, %v1819
    %1822 = vst.msk [vmem:[#allocation15 + $0x8] sm:$0xff] %vm119, %v1820
    // Predicated region
    $region70: #{tpu_custom_call.1} parent=1 // pred_check
      _
    $region71: #{tpu_custom_call.1} parent=1 // pred_check_branch
      %1824 = sbr.rel (0) target = $region73
    $region72: #{tpu_custom_call.1} parent=1 // pred_region
      %s1826 = ssub.s32 256, 256
      %1827 = vsyncadd [#allocation8], %s1826
      %s1828 = sshll.u32 [#allocation15], 4
      %s1829 = int_to_ptr.vmem [resolvable:$true] %s1828
      %1834 = dma.vmem_to_hbm [thread:$0]  %s1829, 256, %s12, [#allocation8], 128, 128, 8
    $region73: #{tpu_custom_call.1} parent=1 // pred_fallthru
      _
    // Predicated region
    $region74: #{tpu_custom_call.1} parent=1 // pred_check
      _
    $region75: #{tpu_custom_call.1} parent=1 // pred_check_branch
      %1836 = sbr.rel (0) target = $region77
    $region76: #{tpu_custom_call.1} parent=1 // pred_region
      %1837 = dma.done [#allocation8], 256
    $region77: #{tpu_custom_call.1} parent=1 // pred_fallthru
      _
    %1838 = vsyncpa [#allocation7], 1
    %1839 = vsyncpa [#allocation10], 1
    %1840 = vsyncpa [#allocation13], 1
    %1841 = vsyncpa [#allocation8], 1

</llo_original>
